<compile_context>
chip_gen: v7x
topology: tpu7x:2x2x1
jax: 0.10.0
libtpu: 0.0.40
codegen_flags: <defaults>
</compile_context>

<pallas_src>
import functools
import math

import jax
import jax.numpy as jnp
from jax.experimental import pallas as pl
from jax.experimental.pallas import tpu as pltpu


# ----------------------------------------------------------------------------
# Synthetic small-BERT config (bert-base-uncased scaled down to test shapes)
# ----------------------------------------------------------------------------
CFG = dict(
    vocab_size=128,
    hidden=32,
    num_layers=2,
    num_heads=2,
    intermediate=64,
    max_pos=16,
    type_vocab=2,
    num_gender_labels=2,
    num_age_labels=4,
)

_LANES = 128  # padded lane width of the packed parameter slabs / logits


# ----------------------------------------------------------------------------
# Packed-slab layouts (shared by host-side packing and in-kernel carving)
# ----------------------------------------------------------------------------
def _weight_layout(cfg):
    """Row layout of the packed bf16 weight slab [rows, 128]: (row, nrows, ncols)."""
    H, I, L = cfg["hidden"], cfg["intermediate"], cfg["num_layers"]
    layout, off = {}, 0
    for l in range(L):
        layout[("qkv", l)] = (off, H, 3 * H); off += H      # fused Q|K|V
        layout[("o", l)] = (off, H, H); off += H
        layout[("i", l)] = (off, H, I); off += H
        layout[("f", l)] = (off, I, H); off += I
    layout["pool"] = (off, H, H); off += H
    layout["cls"] = (off, H, _LANES); off += H              # classifier padded to 128
    rows = ((off + 7) // 8) * 8
    return layout, rows


def _bias_layout(cfg):
    """Row layout of the packed f32 bias / LayerNorm slab [rows, 128]: (row, width)."""
    H, I, L = cfg["hidden"], cfg["intermediate"], cfg["num_layers"]
    layout, off = {}, 0
    layout["emb_ln_g"] = (off, H); off += 1
    layout["emb_ln_b"] = (off, H); off += 1
    for l in range(L):
        for name, width in (("qkv_b", 3 * H), ("o_b", H), ("ln1_g", H),
                            ("ln1_b", H), ("i_b", I), ("f_b", H),
                            ("ln2_g", H), ("ln2_b", H)):
            layout[(name, l)] = (off, width); off += 1
    layout["pool_b"] = (off, H); off += 1
    layout["cls_b"] = (off, _LANES); off += 1
    rows = ((off + 7) // 8) * 8
    return layout, rows


# ----------------------------------------------------------------------------
# Fused Pallas kernel: single grid step == whole batch, whole forward pass
# ----------------------------------------------------------------------------
def _fused_bert_kernel(emb_ref, mask_ref, w_ref, b_ref, out_ref,
                       *, cfg, wl, bl, eps):
    B = mask_ref.shape[0]
    S = mask_ref.shape[2]
    H = cfg["hidden"]
    NH = cfg["num_heads"]
    L = cfg["num_layers"]
    Dh = H // NH
    scale = 1.0 / math.sqrt(Dh)
    bf16 = jnp.bfloat16

    def wview(key):
        r, n, c = wl[key]
        return w_ref[r:r + n, :c]              # static slice of the VMEM slab

    def bview(key):
        r, c = bl[key]
        return b_ref[r:r + 1, :c]              # [1, c], broadcasts over rows

    def layer_norm(y, g, b):
        mu = jnp.mean(y, axis=-1, keepdims=True)
        var = jnp.mean(jnp.square(y - mu), axis=-1, keepdims=True)
        return (y - mu) * jax.lax.rsqrt(var + eps) * g + b

    def dense(y, w, b):
        # bf16 operands on the MXU with f32 accumulation; bias add in f32.
        return jnp.dot(y.astype(bf16), w, preferred_element_type=jnp.float32) + b

    # Embedding LayerNorm on the whole stacked [B*S, H] tile.
    x = layer_norm(emb_ref[...], bview("emb_ln_g"), bview("emb_ln_b"))

    # Hoisted additive attention mask: materialized ONCE, reused by all layers/heads.
    add_mask = jnp.broadcast_to(mask_ref[...], (B, S, S))           # [B, S, S]

    for l in range(L):
        # Fused QKV projection: one [B*S, H] @ [H, 3H] matmul.
        qkv = dense(x, wview(("qkv", l)), bview(("qkv_b", l)))      # [B*S, 3H] f32

        # Per-head attention, batched over B inside each dot_general; each
        # head's context is folded straight into the output projection
        # (no concatenate, no explicit transpose).
        o_w = wview(("o", l))                                       # [H, H] bf16
        attn = jnp.zeros((B * S, H), jnp.float32)
        for h in range(NH):
            q = qkv[:, h * Dh:(h + 1) * Dh].astype(bf16).reshape(B, S, Dh)
            k = qkv[:, H + h * Dh:H + (h + 1) * Dh].astype(bf16).reshape(B, S, Dh)
            v = qkv[:, 2 * H + h * Dh:2 * H + (h + 1) * Dh].astype(bf16).reshape(B, S, Dh)
            s = jnp.einsum("bqd,bkd->bqk", q, k,
                           preferred_element_type=jnp.float32) * scale + add_mask
            s = s - jnp.max(s, axis=-1, keepdims=True)
            p = jnp.exp(s)
            p = p * pl.reciprocal(jnp.sum(p, axis=-1, keepdims=True), approx=True)
            ctx = jnp.einsum("bqk,bkd->bqd", p.astype(bf16), v,
                             preferred_element_type=jnp.float32)    # [B, S, Dh]
            attn = attn + jnp.dot(ctx.reshape(B * S, Dh).astype(bf16),
                                  o_w[h * Dh:(h + 1) * Dh, :],
                                  preferred_element_type=jnp.float32)
        attn = attn + bview(("o_b", l))

        # Residual + LN1, feed-forward, residual + LN2.
        x = layer_norm(attn + x, bview(("ln1_g", l)), bview(("ln1_b", l)))
        inter = dense(x, wview(("i", l)), bview(("i_b", l)))
        # TODO(synk): HF BERT uses exact erf-GELU; tanh approximation used here.
        inter = jax.nn.gelu(inter, approximate=True)
        x = layer_norm(dense(inter, wview(("f", l)), bview(("f_b", l))) + x,
                       bview(("ln2_g", l)), bview(("ln2_b", l)))

    # Pooler on the [CLS] token of every sequence, then the fused, lane-padded
    # gender+age classifier head -> one lane-dense [B, 128] store.
    cls_tok = x.reshape(B, S, H)[:, 0, :]                           # [B, H]
    pooled = jnp.tanh(dense(cls_tok, wview("pool"), bview("pool_b")))
    logits = dense(pooled, wview("cls"), bview("cls_b"))            # [B, 128]
    out_ref[...] = logits.astype(out_ref.dtype)


# ----------------------------------------------------------------------------
# Parameter init + packing into two lane-dense slabs
# ----------------------------------------------------------------------------
def init_params(key, cfg):
    keys = list(jax.random.split(key, 64))
    k_iter = iter(keys)

    def nrm(shape):
        return jax.random.normal(next(k_iter), shape, jnp.float32) * 0.02

    H, I = cfg["hidden"], cfg["intermediate"]
    p = {
        "word_emb": nrm((cfg["vocab_size"], H)),
        "pos_emb": nrm((cfg["max_pos"], H)),
        "type_emb": nrm((cfg["type_vocab"], H)),
        "emb_ln_g": jnp.ones((H,), jnp.float32),
        "emb_ln_b": jnp.zeros((H,), jnp.float32),
        "layers": [],
        "pooler_w": nrm((H, H)),
        "pooler_b": jnp.zeros((H,), jnp.float32),
        "gender_w": nrm((H, cfg["num_gender_labels"])),
        "gender_b": jnp.zeros((cfg["num_gender_labels"],), jnp.float32),
        "age_w": nrm((H, cfg["num_age_labels"])),
        "age_b": jnp.zeros((cfg["num_age_labels"],), jnp.float32),
    }
    for _ in range(cfg["num_layers"]):
        p["layers"].append({
            "q_w": nrm((H, H)), "q_b": jnp.zeros((H,), jnp.float32),
            "k_w": nrm((H, H)), "k_b": jnp.zeros((H,), jnp.float32),
            "v_w": nrm((H, H)), "v_b": jnp.zeros((H,), jnp.float32),
            "o_w": nrm((H, H)), "o_b": jnp.zeros((H,), jnp.float32),
            "ln1_g": jnp.ones((H,), jnp.float32), "ln1_b": jnp.zeros((H,), jnp.float32),
            "i_w": nrm((H, I)), "i_b": jnp.zeros((I,), jnp.float32),
            "f_w": nrm((I, H)), "f_b": jnp.zeros((H,), jnp.float32),
            "ln2_g": jnp.ones((H,), jnp.float32), "ln2_b": jnp.zeros((H,), jnp.float32),
        })
    return p


def _pack_params(params, cfg):
    wl, wrows = _weight_layout(cfg)
    bl, brows = _bias_layout(cfg)

    w_slab = jnp.zeros((wrows, _LANES), jnp.float32)
    b_slab = jnp.zeros((brows, _LANES), jnp.float32)

    def put_w(slab, key, mat):
        r, _, _ = wl[key]
        return slab.at[r:r + mat.shape[0], :mat.shape[1]].set(mat)

    def put_b(slab, key, vec):
        r, _ = bl[key]
        return slab.at[r, :vec.shape[0]].set(vec)

    b_slab = put_b(b_slab, "emb_ln_g", params["emb_ln_g"])
    b_slab = put_b(b_slab, "emb_ln_b", params["emb_ln_b"])
    for l, lp in enumerate(params["layers"]):
        w_slab = put_w(w_slab, ("qkv", l),
                       jnp.concatenate([lp["q_w"], lp["k_w"], lp["v_w"]], axis=1))
        w_slab = put_w(w_slab, ("o", l), lp["o_w"])
        w_slab = put_w(w_slab, ("i", l), lp["i_w"])
        w_slab = put_w(w_slab, ("f", l), lp["f_w"])
        b_slab = put_b(b_slab, ("qkv_b", l),
                       jnp.concatenate([lp["q_b"], lp["k_b"], lp["v_b"]]))
        b_slab = put_b(b_slab, ("o_b", l), lp["o_b"])
        b_slab = put_b(b_slab, ("ln1_g", l), lp["ln1_g"])
        b_slab = put_b(b_slab, ("ln1_b", l), lp["ln1_b"])
        b_slab = put_b(b_slab, ("i_b", l), lp["i_b"])
        b_slab = put_b(b_slab, ("f_b", l), lp["f_b"])
        b_slab = put_b(b_slab, ("ln2_g", l), lp["ln2_g"])
        b_slab = put_b(b_slab, ("ln2_b", l), lp["ln2_b"])
    w_slab = put_w(w_slab, "pool", params["pooler_w"])
    b_slab = put_b(b_slab, "pool_b", params["pooler_b"])
    # Fused classifier head, zero-padded to 128 output lanes (lane-dense store).
    cls_w = jnp.concatenate([params["gender_w"], params["age_w"]], axis=1)
    w_slab = put_w(w_slab, "cls", cls_w)
    b_slab = put_b(b_slab, "cls_b",
                   jnp.concatenate([params["gender_b"], params["age_b"]]))

    return w_slab.astype(jnp.bfloat16), b_slab


# ----------------------------------------------------------------------------
# Forward pass
# ----------------------------------------------------------------------------
def bert_author_profiling_forward(params, input_ids, attention_mask, cfg=CFG):
    B, S = input_ids.shape
    H = cfg["hidden"]
    NG, NA = cfg["num_gender_labels"], cfg["num_age_labels"]

    # Embedding gathers stay in plain JAX (data-dependent); token_type_ids = 0.
    tok = jnp.take(params["word_emb"], input_ids, axis=0)              # [B, S, H]
    pos = params["pos_emb"][:S][None, :, :]
    typ = params["type_emb"][0][None, None, :]
    emb = (tok + pos + typ).astype(jnp.float32).reshape(B * S, H)      # folded batch

    # Additive attention mask (0 keep, -10000 masked), one row per example.
    add_mask = ((1.0 - attention_mask.astype(jnp.float32)) * -10000.0)[:, None, :]  # [B,1,S]

    w_slab, b_slab = _pack_params(params, cfg)
    wl, _ = _weight_layout(cfg)
    bl, _ = _bias_layout(cfg)
    kernel = functools.partial(_fused_bert_kernel, cfg=cfg, wl=wl, bl=bl, eps=1e-12)

    def full(arr):
        return pl.BlockSpec(arr.shape, lambda i, _nd=arr.ndim: (0,) * _nd)

    logits = pl.pallas_call(
        kernel,
        out_shape=jax.ShapeDtypeStruct((B, _LANES), jnp.float32),
        grid=(1,),                                   # whole forward in ONE grid step
        in_specs=[full(emb), full(add_mask), full(w_slab), full(b_slab)],  # 4 DMAs total
        out_specs=pl.BlockSpec((B, _LANES), lambda i: (0, 0)),
        compiler_params=pltpu.CompilerParams(
            dimension_semantics=("arbitrary",)),
    )(emb, add_mask, w_slab, b_slab)

    # nn.Dropout(0.3) is identity at inference; heads were fused + lane-padded.
    return logits[:, :NG], logits[:, NG:NG + NA]


# ----------------------------------------------------------------------------
if __name__ == "__main__":
    key = jax.random.PRNGKey(0)
    pkey, ikey = jax.random.split(key)

    params = init_params(pkey, CFG)

    B, S = 2, 8
    input_ids = jax.random.randint(ikey, (B, S), 0, CFG["vocab_size"], dtype=jnp.int32)
    attention_mask = jnp.array(
        [[1, 1, 1, 1, 1, 1, 1, 1],
         [1, 1, 1, 1, 1, 0, 0, 0]], dtype=jnp.int32)

    gender_logits, age_logits = bert_author_profiling_forward(
        params, input_ids, attention_mask)
    jax.block_until_ready((gender_logits, age_logits))

    assert gender_logits.shape == (B, CFG["num_gender_labels"])
    assert age_logits.shape == (B, CFG["num_age_labels"])
    assert bool(jnp.all(jnp.isfinite(gender_logits)))
    assert bool(jnp.all(jnp.isfinite(age_logits)))
    print("KERNEL_OK")
</pallas_src>

<mosaic_0001>
module attributes {stable_mosaic.version = 11 : i64} {
  func.func @_fused_bert_kernel(%arg0: i32, %arg1: memref<16x32xf32, #tpu.memory_space<vmem>>, %arg2: memref<2x1x8xf32, #tpu.memory_space<vmem>>, %arg3: memref<384x128xbf16, #tpu.memory_space<vmem>>, %arg4: memref<24x128xf32, #tpu.memory_space<vmem>>, %arg5: memref<2x128xf32, #tpu.memory_space<vmem>>) attributes {dimension_semantics = [#tpu.dimension_semantics<arbitrary>], iteration_bounds = array<i64: 1>, scalar_prefetch = 0 : i64, scratch_operands = 0 : i64, tpu.core_type = #tpu.core_type<tc>, window_params = [{pipeline_mode = #tpu.pipeline_mode<synchronous>, transform_indices = @transform_0, window_bounds = array<i64: 16, 32>}, {pipeline_mode = #tpu.pipeline_mode<synchronous>, transform_indices = @transform_1, window_bounds = array<i64: 2, 1, 8>}, {pipeline_mode = #tpu.pipeline_mode<synchronous>, transform_indices = @transform_2, window_bounds = array<i64: 384, 128>}, {pipeline_mode = #tpu.pipeline_mode<synchronous>, transform_indices = @transform_3, window_bounds = array<i64: 24, 128>}, {pipeline_mode = #tpu.pipeline_mode<synchronous>, transform_indices = @transform_4, window_bounds = array<i64: 2, 128>}]} {
    %c0 = arith.constant 0 : index
    %c0_0 = arith.constant 0 : index
    %0 = vector.load %arg1[%c0, %c0_0] : memref<16x32xf32, #tpu.memory_space<vmem>>, vector<16x32xf32>
    %c0_1 = arith.constant 0 : index
    %c0_2 = arith.constant 0 : index
    %1 = vector.load %arg4[%c0_1, %c0_2] : memref<24x128xf32, #tpu.memory_space<vmem>>, vector<1x32xf32>
    %c1 = arith.constant 1 : index
    %c0_3 = arith.constant 0 : index
    %2 = vector.load %arg4[%c1, %c0_3] : memref<24x128xf32, #tpu.memory_space<vmem>>, vector<1x32xf32>
    %cst = arith.constant dense<0.000000e+00> : vector<16xf32>
    %3 = vector.multi_reduction <add>, %0, %cst [1] : vector<16x32xf32> to vector<16xf32>
    %4 = vector.shape_cast %3 : vector<16xf32> to vector<16x1xf32>
    %cst_4 = arith.constant 3.200000e+01 : f32
    %5 = vector.broadcast %cst_4 : f32 to vector<16x1xf32>
    %6 = arith.divf %4, %5 : vector<16x1xf32>
    %7 = vector.broadcast %6 : vector<16x1xf32> to vector<16x32xf32>
    %8 = arith.subf %0, %7 : vector<16x32xf32>
    %9 = arith.mulf %8, %8 : vector<16x32xf32>
    %cst_5 = arith.constant dense<0.000000e+00> : vector<16xf32>
    %10 = vector.multi_reduction <add>, %9, %cst_5 [1] : vector<16x32xf32> to vector<16xf32>
    %11 = vector.shape_cast %10 : vector<16xf32> to vector<16x1xf32>
    %cst_6 = arith.constant 3.200000e+01 : f32
    %12 = vector.broadcast %cst_6 : f32 to vector<16x1xf32>
    %13 = arith.divf %11, %12 : vector<16x1xf32>
    %14 = vector.broadcast %6 : vector<16x1xf32> to vector<16x32xf32>
    %15 = arith.subf %0, %14 : vector<16x32xf32>
    %cst_7 = arith.constant 9.99999996E-13 : f32
    %16 = vector.broadcast %cst_7 : f32 to vector<16x1xf32>
    %17 = arith.addf %13, %16 : vector<16x1xf32>
    %18 = math.rsqrt %17 : vector<16x1xf32>
    %19 = vector.broadcast %18 : vector<16x1xf32> to vector<16x32xf32>
    %20 = arith.mulf %15, %19 : vector<16x32xf32>
    %21 = vector.broadcast %1 : vector<1x32xf32> to vector<16x32xf32>
    %22 = arith.mulf %20, %21 : vector<16x32xf32>
    %23 = vector.broadcast %2 : vector<1x32xf32> to vector<16x32xf32>
    %24 = arith.addf %22, %23 : vector<16x32xf32>
    %c0_8 = arith.constant 0 : index
    %c0_9 = arith.constant 0 : index
    %c0_10 = arith.constant 0 : index
    %25 = vector.load %arg2[%c0_8, %c0_9, %c0_10] : memref<2x1x8xf32, #tpu.memory_space<vmem>>, vector<2x1x8xf32>
    %26 = vector.shape_cast %25 : vector<2x1x8xf32> to vector<2x1x8xf32>
    %27 = vector.broadcast %26 : vector<2x1x8xf32> to vector<2x8x8xf32>
    %c0_11 = arith.constant 0 : index
    %c0_12 = arith.constant 0 : index
    %28 = vector.load %arg3[%c0_11, %c0_12] : memref<384x128xbf16, #tpu.memory_space<vmem>>, vector<32x96xbf16>
    %c2 = arith.constant 2 : index
    %c0_13 = arith.constant 0 : index
    %29 = vector.load %arg4[%c2, %c0_13] : memref<24x128xf32, #tpu.memory_space<vmem>>, vector<1x96xf32>
    %30 = arith.truncf %24 : vector<16x32xf32> to vector<16x32xbf16>
    %cst_14 = arith.constant dense<0.000000e+00> : vector<16x96xf32>
    %31 = tpu.matmul %30, %28, %cst_14 {dimension_numbers = #tpu.dot_dimension_numbers<[1], [0], [0], [1], [0, 0, 1, 1], [], []>} : vector<16x32xbf16>, vector<32x96xbf16>, vector<16x96xf32> -> vector<16x96xf32>
    %32 = vector.broadcast %29 : vector<1x96xf32> to vector<16x96xf32>
    %33 = arith.addf %31, %32 : vector<16x96xf32>
    %c32 = arith.constant 32 : index
    %c0_15 = arith.constant 0 : index
    %34 = vector.load %arg3[%c32, %c0_15] : memref<384x128xbf16, #tpu.memory_space<vmem>>, vector<32x32xbf16>
    %cst_16 = arith.constant 0.000000e+00 : f32
    %35 = vector.broadcast %cst_16 : f32 to vector<16x32xf32>
    %36 = vector.extract_strided_slice %33 {offsets = [0, 0], sizes = [16, 16], strides = [1, 1]} : vector<16x96xf32> to vector<16x16xf32>
    %37 = arith.truncf %36 : vector<16x16xf32> to vector<16x16xbf16>
    %38 = vector.shape_cast %37 : vector<16x16xbf16> to vector<2x8x16xbf16>
    %39 = vector.extract_strided_slice %33 {offsets = [0, 32], sizes = [16, 16], strides = [1, 1]} : vector<16x96xf32> to vector<16x16xf32>
    %40 = arith.truncf %39 : vector<16x16xf32> to vector<16x16xbf16>
    %41 = vector.shape_cast %40 : vector<16x16xbf16> to vector<2x8x16xbf16>
    %42 = vector.extract_strided_slice %33 {offsets = [0, 64], sizes = [16, 16], strides = [1, 1]} : vector<16x96xf32> to vector<16x16xf32>
    %43 = arith.truncf %42 : vector<16x16xf32> to vector<16x16xbf16>
    %44 = vector.shape_cast %43 : vector<16x16xbf16> to vector<2x8x16xbf16>
    "tpu.trace_start"() <{level = 10 : i32, message = "bqd,bkd->bqk"}> : () -> ()
    %cst_17 = arith.constant dense<0.000000e+00> : vector<2x8x8xf32>
    %45 = tpu.matmul %38, %41, %cst_17 {dimension_numbers = #tpu.dot_dimension_numbers<[2], [2], [1], [1], [0, 0, 0, 1, 1, 1], [0], [0]>} : vector<2x8x16xbf16>, vector<2x8x16xbf16>, vector<2x8x8xf32> -> vector<2x8x8xf32>
    "tpu.trace_stop"() : () -> ()
    %cst_18 = arith.constant 2.500000e-01 : f32
    %46 = vector.broadcast %cst_18 : f32 to vector<2x8x8xf32>
    %47 = arith.mulf %45, %46 : vector<2x8x8xf32>
    %48 = arith.addf %47, %27 : vector<2x8x8xf32>
    %cst_19 = arith.constant dense<0xFF800000> : vector<2x8xf32>
    %49 = vector.multi_reduction <maximumf>, %48, %cst_19 [2] : vector<2x8x8xf32> to vector<2x8xf32>
    %50 = vector.shape_cast %49 : vector<2x8xf32> to vector<2x8x1xf32>
    %51 = vector.broadcast %50 : vector<2x8x1xf32> to vector<2x8x8xf32>
    %52 = arith.subf %48, %51 : vector<2x8x8xf32>
    %53 = math.exp %52 : vector<2x8x8xf32>
    %cst_20 = arith.constant dense<0.000000e+00> : vector<2x8xf32>
    %54 = vector.multi_reduction <add>, %53, %cst_20 [2] : vector<2x8x8xf32> to vector<2x8xf32>
    %55 = vector.shape_cast %54 : vector<2x8xf32> to vector<2x8x1xf32>
    %56 = tpu.reciprocal %55 {approx = true} : vector<2x8x1xf32> -> vector<2x8x1xf32>
    %57 = vector.broadcast %56 : vector<2x8x1xf32> to vector<2x8x8xf32>
    %58 = arith.mulf %53, %57 : vector<2x8x8xf32>
    %59 = arith.truncf %58 : vector<2x8x8xf32> to vector<2x8x8xbf16>
    "tpu.trace_start"() <{level = 10 : i32, message = "bqk,bkd->bqd"}> : () -> ()
    %cst_21 = arith.constant dense<0.000000e+00> : vector<2x8x16xf32>
    %60 = tpu.matmul %59, %44, %cst_21 {dimension_numbers = #tpu.dot_dimension_numbers<[2], [1], [1], [2], [0, 0, 0, 1, 1, 2], [0], [0]>} : vector<2x8x8xbf16>, vector<2x8x16xbf16>, vector<2x8x16xf32> -> vector<2x8x16xf32>
    "tpu.trace_stop"() : () -> ()
    %61 = vector.shape_cast %60 : vector<2x8x16xf32> to vector<16x16xf32>
    %62 = arith.truncf %61 : vector<16x16xf32> to vector<16x16xbf16>
    %63 = vector.extract_strided_slice %34 {offsets = [0, 0], sizes = [16, 32], strides = [1, 1]} : vector<32x32xbf16> to vector<16x32xbf16>
    %cst_22 = arith.constant dense<0.000000e+00> : vector<16x32xf32>
    %64 = tpu.matmul %62, %63, %cst_22 {dimension_numbers = #tpu.dot_dimension_numbers<[1], [0], [0], [1], [0, 0, 1, 1], [], []>} : vector<16x16xbf16>, vector<16x32xbf16>, vector<16x32xf32> -> vector<16x32xf32>
    %65 = arith.addf %35, %64 : vector<16x32xf32>
    %66 = vector.extract_strided_slice %33 {offsets = [0, 16], sizes = [16, 16], strides = [1, 1]} : vector<16x96xf32> to vector<16x16xf32>
    %67 = arith.truncf %66 : vector<16x16xf32> to vector<16x16xbf16>
    %68 = vector.shape_cast %67 : vector<16x16xbf16> to vector<2x8x16xbf16>
    %69 = vector.extract_strided_slice %33 {offsets = [0, 48], sizes = [16, 16], strides = [1, 1]} : vector<16x96xf32> to vector<16x16xf32>
    %70 = arith.truncf %69 : vector<16x16xf32> to vector<16x16xbf16>
    %71 = vector.shape_cast %70 : vector<16x16xbf16> to vector<2x8x16xbf16>
    %72 = vector.extract_strided_slice %33 {offsets = [0, 80], sizes = [16, 16], strides = [1, 1]} : vector<16x96xf32> to vector<16x16xf32>
    %73 = arith.truncf %72 : vector<16x16xf32> to vector<16x16xbf16>
    %74 = vector.shape_cast %73 : vector<16x16xbf16> to vector<2x8x16xbf16>
    "tpu.trace_start"() <{level = 10 : i32, message = "bqd,bkd->bqk"}> : () -> ()
    %cst_23 = arith.constant dense<0.000000e+00> : vector<2x8x8xf32>
    %75 = tpu.matmul %68, %71, %cst_23 {dimension_numbers = #tpu.dot_dimension_numbers<[2], [2], [1], [1], [0, 0, 0, 1, 1, 1], [0], [0]>} : vector<2x8x16xbf16>, vector<2x8x16xbf16>, vector<2x8x8xf32> -> vector<2x8x8xf32>
    "tpu.trace_stop"() : () -> ()
    %cst_24 = arith.constant 2.500000e-01 : f32
    %76 = vector.broadcast %cst_24 : f32 to vector<2x8x8xf32>
    %77 = arith.mulf %75, %76 : vector<2x8x8xf32>
    %78 = arith.addf %77, %27 : vector<2x8x8xf32>
    %cst_25 = arith.constant dense<0xFF800000> : vector<2x8xf32>
    %79 = vector.multi_reduction <maximumf>, %78, %cst_25 [2] : vector<2x8x8xf32> to vector<2x8xf32>
    %80 = vector.shape_cast %79 : vector<2x8xf32> to vector<2x8x1xf32>
    %81 = vector.broadcast %80 : vector<2x8x1xf32> to vector<2x8x8xf32>
    %82 = arith.subf %78, %81 : vector<2x8x8xf32>
    %83 = math.exp %82 : vector<2x8x8xf32>
    %cst_26 = arith.constant dense<0.000000e+00> : vector<2x8xf32>
    %84 = vector.multi_reduction <add>, %83, %cst_26 [2] : vector<2x8x8xf32> to vector<2x8xf32>
    %85 = vector.shape_cast %84 : vector<2x8xf32> to vector<2x8x1xf32>
    %86 = tpu.reciprocal %85 {approx = true} : vector<2x8x1xf32> -> vector<2x8x1xf32>
    %87 = vector.broadcast %86 : vector<2x8x1xf32> to vector<2x8x8xf32>
    %88 = arith.mulf %83, %87 : vector<2x8x8xf32>
    %89 = arith.truncf %88 : vector<2x8x8xf32> to vector<2x8x8xbf16>
    "tpu.trace_start"() <{level = 10 : i32, message = "bqk,bkd->bqd"}> : () -> ()
    %cst_27 = arith.constant dense<0.000000e+00> : vector<2x8x16xf32>
    %90 = tpu.matmul %89, %74, %cst_27 {dimension_numbers = #tpu.dot_dimension_numbers<[2], [1], [1], [2], [0, 0, 0, 1, 1, 2], [0], [0]>} : vector<2x8x8xbf16>, vector<2x8x16xbf16>, vector<2x8x16xf32> -> vector<2x8x16xf32>
    "tpu.trace_stop"() : () -> ()
    %91 = vector.shape_cast %90 : vector<2x8x16xf32> to vector<16x16xf32>
    %92 = arith.truncf %91 : vector<16x16xf32> to vector<16x16xbf16>
    %93 = vector.extract_strided_slice %34 {offsets = [16, 0], sizes = [16, 32], strides = [1, 1]} : vector<32x32xbf16> to vector<16x32xbf16>
    %cst_28 = arith.constant dense<0.000000e+00> : vector<16x32xf32>
    %94 = tpu.matmul %92, %93, %cst_28 {dimension_numbers = #tpu.dot_dimension_numbers<[1], [0], [0], [1], [0, 0, 1, 1], [], []>} : vector<16x16xbf16>, vector<16x32xbf16>, vector<16x32xf32> -> vector<16x32xf32>
    %95 = arith.addf %65, %94 : vector<16x32xf32>
    %c3 = arith.constant 3 : index
    %c0_29 = arith.constant 0 : index
    %96 = vector.load %arg4[%c3, %c0_29] : memref<24x128xf32, #tpu.memory_space<vmem>>, vector<1x32xf32>
    %97 = vector.broadcast %96 : vector<1x32xf32> to vector<16x32xf32>
    %98 = arith.addf %95, %97 : vector<16x32xf32>
    %99 = arith.addf %98, %24 : vector<16x32xf32>
    %c4 = arith.constant 4 : index
    %c0_30 = arith.constant 0 : index
    %100 = vector.load %arg4[%c4, %c0_30] : memref<24x128xf32, #tpu.memory_space<vmem>>, vector<1x32xf32>
    %c5 = arith.constant 5 : index
    %c0_31 = arith.constant 0 : index
    %101 = vector.load %arg4[%c5, %c0_31] : memref<24x128xf32, #tpu.memory_space<vmem>>, vector<1x32xf32>
    %cst_32 = arith.constant dense<0.000000e+00> : vector<16xf32>
    %102 = vector.multi_reduction <add>, %99, %cst_32 [1] : vector<16x32xf32> to vector<16xf32>
    %103 = vector.shape_cast %102 : vector<16xf32> to vector<16x1xf32>
    %cst_33 = arith.constant 3.200000e+01 : f32
    %104 = vector.broadcast %cst_33 : f32 to vector<16x1xf32>
    %105 = arith.divf %103, %104 : vector<16x1xf32>
    %106 = vector.broadcast %105 : vector<16x1xf32> to vector<16x32xf32>
    %107 = arith.subf %99, %106 : vector<16x32xf32>
    %108 = arith.mulf %107, %107 : vector<16x32xf32>
    %cst_34 = arith.constant dense<0.000000e+00> : vector<16xf32>
    %109 = vector.multi_reduction <add>, %108, %cst_34 [1] : vector<16x32xf32> to vector<16xf32>
    %110 = vector.shape_cast %109 : vector<16xf32> to vector<16x1xf32>
    %cst_35 = arith.constant 3.200000e+01 : f32
    %111 = vector.broadcast %cst_35 : f32 to vector<16x1xf32>
    %112 = arith.divf %110, %111 : vector<16x1xf32>
    %113 = vector.broadcast %105 : vector<16x1xf32> to vector<16x32xf32>
    %114 = arith.subf %99, %113 : vector<16x32xf32>
    %cst_36 = arith.constant 9.99999996E-13 : f32
    %115 = vector.broadcast %cst_36 : f32 to vector<16x1xf32>
    %116 = arith.addf %112, %115 : vector<16x1xf32>
    %117 = math.rsqrt %116 : vector<16x1xf32>
    %118 = vector.broadcast %117 : vector<16x1xf32> to vector<16x32xf32>
    %119 = arith.mulf %114, %118 : vector<16x32xf32>
    %120 = vector.broadcast %100 : vector<1x32xf32> to vector<16x32xf32>
    %121 = arith.mulf %119, %120 : vector<16x32xf32>
    %122 = vector.broadcast %101 : vector<1x32xf32> to vector<16x32xf32>
    %123 = arith.addf %121, %122 : vector<16x32xf32>
    %c64 = arith.constant 64 : index
    %c0_37 = arith.constant 0 : index
    %124 = vector.load %arg3[%c64, %c0_37] : memref<384x128xbf16, #tpu.memory_space<vmem>>, vector<32x64xbf16>
    %c6 = arith.constant 6 : index
    %c0_38 = arith.constant 0 : index
    %125 = vector.load %arg4[%c6, %c0_38] : memref<24x128xf32, #tpu.memory_space<vmem>>, vector<1x64xf32>
    %126 = arith.truncf %123 : vector<16x32xf32> to vector<16x32xbf16>
    %cst_39 = arith.constant dense<0.000000e+00> : vector<16x64xf32>
    %127 = tpu.matmul %126, %124, %cst_39 {dimension_numbers = #tpu.dot_dimension_numbers<[1], [0], [0], [1], [0, 0, 1, 1], [], []>} : vector<16x32xbf16>, vector<32x64xbf16>, vector<16x64xf32> -> vector<16x64xf32>
    %128 = vector.broadcast %125 : vector<1x64xf32> to vector<16x64xf32>
    %129 = arith.addf %127, %128 : vector<16x64xf32>
    %130 = arith.mulf %129, %129 : vector<16x64xf32>
    %131 = arith.mulf %129, %130 : vector<16x64xf32>
    %cst_40 = arith.constant 4.471500e-02 : f32
    %132 = vector.broadcast %cst_40 : f32 to vector<16x64xf32>
    %133 = arith.mulf %132, %131 : vector<16x64xf32>
    %134 = arith.addf %129, %133 : vector<16x64xf32>
    %cst_41 = arith.constant 0.797884583 : f32
    %135 = vector.broadcast %cst_41 : f32 to vector<16x64xf32>
    %136 = arith.mulf %135, %134 : vector<16x64xf32>
    %137 = math.tanh %136 : vector<16x64xf32>
    %cst_42 = arith.constant 1.000000e+00 : f32
    %138 = vector.broadcast %cst_42 : f32 to vector<16x64xf32>
    %139 = arith.addf %138, %137 : vector<16x64xf32>
    %cst_43 = arith.constant 5.000000e-01 : f32
    %140 = vector.broadcast %cst_43 : f32 to vector<16x64xf32>
    %141 = arith.mulf %140, %139 : vector<16x64xf32>
    %142 = arith.mulf %129, %141 : vector<16x64xf32>
    %c96 = arith.constant 96 : index
    %c0_44 = arith.constant 0 : index
    %143 = vector.load %arg3[%c96, %c0_44] : memref<384x128xbf16, #tpu.memory_space<vmem>>, vector<64x32xbf16>
    %c7 = arith.constant 7 : index
    %c0_45 = arith.constant 0 : index
    %144 = vector.load %arg4[%c7, %c0_45] : memref<24x128xf32, #tpu.memory_space<vmem>>, vector<1x32xf32>
    %145 = arith.truncf %142 : vector<16x64xf32> to vector<16x64xbf16>
    %cst_46 = arith.constant dense<0.000000e+00> : vector<16x32xf32>
    %146 = tpu.matmul %145, %143, %cst_46 {dimension_numbers = #tpu.dot_dimension_numbers<[1], [0], [0], [1], [0, 0, 1, 1], [], []>} : vector<16x64xbf16>, vector<64x32xbf16>, vector<16x32xf32> -> vector<16x32xf32>
    %147 = vector.broadcast %144 : vector<1x32xf32> to vector<16x32xf32>
    %148 = arith.addf %146, %147 : vector<16x32xf32>
    %149 = arith.addf %148, %123 : vector<16x32xf32>
    %c8 = arith.constant 8 : index
    %c0_47 = arith.constant 0 : index
    %150 = vector.load %arg4[%c8, %c0_47] : memref<24x128xf32, #tpu.memory_space<vmem>>, vector<1x32xf32>
    %c9 = arith.constant 9 : index
    %c0_48 = arith.constant 0 : index
    %151 = vector.load %arg4[%c9, %c0_48] : memref<24x128xf32, #tpu.memory_space<vmem>>, vector<1x32xf32>
    %cst_49 = arith.constant dense<0.000000e+00> : vector<16xf32>
    %152 = vector.multi_reduction <add>, %149, %cst_49 [1] : vector<16x32xf32> to vector<16xf32>
    %153 = vector.shape_cast %152 : vector<16xf32> to vector<16x1xf32>
    %cst_50 = arith.constant 3.200000e+01 : f32
    %154 = vector.broadcast %cst_50 : f32 to vector<16x1xf32>
    %155 = arith.divf %153, %154 : vector<16x1xf32>
    %156 = vector.broadcast %155 : vector<16x1xf32> to vector<16x32xf32>
    %157 = arith.subf %149, %156 : vector<16x32xf32>
    %158 = arith.mulf %157, %157 : vector<16x32xf32>
    %cst_51 = arith.constant dense<0.000000e+00> : vector<16xf32>
    %159 = vector.multi_reduction <add>, %158, %cst_51 [1] : vector<16x32xf32> to vector<16xf32>
    %160 = vector.shape_cast %159 : vector<16xf32> to vector<16x1xf32>
    %cst_52 = arith.constant 3.200000e+01 : f32
    %161 = vector.broadcast %cst_52 : f32 to vector<16x1xf32>
    %162 = arith.divf %160, %161 : vector<16x1xf32>
    %163 = vector.broadcast %155 : vector<16x1xf32> to vector<16x32xf32>
    %164 = arith.subf %149, %163 : vector<16x32xf32>
    %cst_53 = arith.constant 9.99999996E-13 : f32
    %165 = vector.broadcast %cst_53 : f32 to vector<16x1xf32>
    %166 = arith.addf %162, %165 : vector<16x1xf32>
    %167 = math.rsqrt %166 : vector<16x1xf32>
    %168 = vector.broadcast %167 : vector<16x1xf32> to vector<16x32xf32>
    %169 = arith.mulf %164, %168 : vector<16x32xf32>
    %170 = vector.broadcast %150 : vector<1x32xf32> to vector<16x32xf32>
    %171 = arith.mulf %169, %170 : vector<16x32xf32>
    %172 = vector.broadcast %151 : vector<1x32xf32> to vector<16x32xf32>
    %173 = arith.addf %171, %172 : vector<16x32xf32>
    %c160 = arith.constant 160 : index
    %c0_54 = arith.constant 0 : index
    %174 = vector.load %arg3[%c160, %c0_54] : memref<384x128xbf16, #tpu.memory_space<vmem>>, vector<32x96xbf16>
    %c10 = arith.constant 10 : index
    %c0_55 = arith.constant 0 : index
    %175 = vector.load %arg4[%c10, %c0_55] : memref<24x128xf32, #tpu.memory_space<vmem>>, vector<1x96xf32>
    %176 = arith.truncf %173 : vector<16x32xf32> to vector<16x32xbf16>
    %cst_56 = arith.constant dense<0.000000e+00> : vector<16x96xf32>
    %177 = tpu.matmul %176, %174, %cst_56 {dimension_numbers = #tpu.dot_dimension_numbers<[1], [0], [0], [1], [0, 0, 1, 1], [], []>} : vector<16x32xbf16>, vector<32x96xbf16>, vector<16x96xf32> -> vector<16x96xf32>
    %178 = vector.broadcast %175 : vector<1x96xf32> to vector<16x96xf32>
    %179 = arith.addf %177, %178 : vector<16x96xf32>
    %c192 = arith.constant 192 : index
    %c0_57 = arith.constant 0 : index
    %180 = vector.load %arg3[%c192, %c0_57] : memref<384x128xbf16, #tpu.memory_space<vmem>>, vector<32x32xbf16>
    %cst_58 = arith.constant 0.000000e+00 : f32
    %181 = vector.broadcast %cst_58 : f32 to vector<16x32xf32>
    %182 = vector.extract_strided_slice %179 {offsets = [0, 0], sizes = [16, 16], strides = [1, 1]} : vector<16x96xf32> to vector<16x16xf32>
    %183 = arith.truncf %182 : vector<16x16xf32> to vector<16x16xbf16>
    %184 = vector.shape_cast %183 : vector<16x16xbf16> to vector<2x8x16xbf16>
    %185 = vector.extract_strided_slice %179 {offsets = [0, 32], sizes = [16, 16], strides = [1, 1]} : vector<16x96xf32> to vector<16x16xf32>
    %186 = arith.truncf %185 : vector<16x16xf32> to vector<16x16xbf16>
    %187 = vector.shape_cast %186 : vector<16x16xbf16> to vector<2x8x16xbf16>
    %188 = vector.extract_strided_slice %179 {offsets = [0, 64], sizes = [16, 16], strides = [1, 1]} : vector<16x96xf32> to vector<16x16xf32>
    %189 = arith.truncf %188 : vector<16x16xf32> to vector<16x16xbf16>
    %190 = vector.shape_cast %189 : vector<16x16xbf16> to vector<2x8x16xbf16>
    "tpu.trace_start"() <{level = 10 : i32, message = "bqd,bkd->bqk"}> : () -> ()
    %cst_59 = arith.constant dense<0.000000e+00> : vector<2x8x8xf32>
    %191 = tpu.matmul %184, %187, %cst_59 {dimension_numbers = #tpu.dot_dimension_numbers<[2], [2], [1], [1], [0, 0, 0, 1, 1, 1], [0], [0]>} : vector<2x8x16xbf16>, vector<2x8x16xbf16>, vector<2x8x8xf32> -> vector<2x8x8xf32>
    "tpu.trace_stop"() : () -> ()
    %cst_60 = arith.constant 2.500000e-01 : f32
    %192 = vector.broadcast %cst_60 : f32 to vector<2x8x8xf32>
    %193 = arith.mulf %191, %192 : vector<2x8x8xf32>
    %194 = arith.addf %193, %27 : vector<2x8x8xf32>
    %cst_61 = arith.constant dense<0xFF800000> : vector<2x8xf32>
    %195 = vector.multi_reduction <maximumf>, %194, %cst_61 [2] : vector<2x8x8xf32> to vector<2x8xf32>
    %196 = vector.shape_cast %195 : vector<2x8xf32> to vector<2x8x1xf32>
    %197 = vector.broadcast %196 : vector<2x8x1xf32> to vector<2x8x8xf32>
    %198 = arith.subf %194, %197 : vector<2x8x8xf32>
    %199 = math.exp %198 : vector<2x8x8xf32>
    %cst_62 = arith.constant dense<0.000000e+00> : vector<2x8xf32>
    %200 = vector.multi_reduction <add>, %199, %cst_62 [2] : vector<2x8x8xf32> to vector<2x8xf32>
    %201 = vector.shape_cast %200 : vector<2x8xf32> to vector<2x8x1xf32>
    %202 = tpu.reciprocal %201 {approx = true} : vector<2x8x1xf32> -> vector<2x8x1xf32>
    %203 = vector.broadcast %202 : vector<2x8x1xf32> to vector<2x8x8xf32>
    %204 = arith.mulf %199, %203 : vector<2x8x8xf32>
    %205 = arith.truncf %204 : vector<2x8x8xf32> to vector<2x8x8xbf16>
    "tpu.trace_start"() <{level = 10 : i32, message = "bqk,bkd->bqd"}> : () -> ()
    %cst_63 = arith.constant dense<0.000000e+00> : vector<2x8x16xf32>
    %206 = tpu.matmul %205, %190, %cst_63 {dimension_numbers = #tpu.dot_dimension_numbers<[2], [1], [1], [2], [0, 0, 0, 1, 1, 2], [0], [0]>} : vector<2x8x8xbf16>, vector<2x8x16xbf16>, vector<2x8x16xf32> -> vector<2x8x16xf32>
    "tpu.trace_stop"() : () -> ()
    %207 = vector.shape_cast %206 : vector<2x8x16xf32> to vector<16x16xf32>
    %208 = arith.truncf %207 : vector<16x16xf32> to vector<16x16xbf16>
    %209 = vector.extract_strided_slice %180 {offsets = [0, 0], sizes = [16, 32], strides = [1, 1]} : vector<32x32xbf16> to vector<16x32xbf16>
    %cst_64 = arith.constant dense<0.000000e+00> : vector<16x32xf32>
    %210 = tpu.matmul %208, %209, %cst_64 {dimension_numbers = #tpu.dot_dimension_numbers<[1], [0], [0], [1], [0, 0, 1, 1], [], []>} : vector<16x16xbf16>, vector<16x32xbf16>, vector<16x32xf32> -> vector<16x32xf32>
    %211 = arith.addf %181, %210 : vector<16x32xf32>
    %212 = vector.extract_strided_slice %179 {offsets = [0, 16], sizes = [16, 16], strides = [1, 1]} : vector<16x96xf32> to vector<16x16xf32>
    %213 = arith.truncf %212 : vector<16x16xf32> to vector<16x16xbf16>
    %214 = vector.shape_cast %213 : vector<16x16xbf16> to vector<2x8x16xbf16>
    %215 = vector.extract_strided_slice %179 {offsets = [0, 48], sizes = [16, 16], strides = [1, 1]} : vector<16x96xf32> to vector<16x16xf32>
    %216 = arith.truncf %215 : vector<16x16xf32> to vector<16x16xbf16>
    %217 = vector.shape_cast %216 : vector<16x16xbf16> to vector<2x8x16xbf16>
    %218 = vector.extract_strided_slice %179 {offsets = [0, 80], sizes = [16, 16], strides = [1, 1]} : vector<16x96xf32> to vector<16x16xf32>
    %219 = arith.truncf %218 : vector<16x16xf32> to vector<16x16xbf16>
    %220 = vector.shape_cast %219 : vector<16x16xbf16> to vector<2x8x16xbf16>
    "tpu.trace_start"() <{level = 10 : i32, message = "bqd,bkd->bqk"}> : () -> ()
    %cst_65 = arith.constant dense<0.000000e+00> : vector<2x8x8xf32>
    %221 = tpu.matmul %214, %217, %cst_65 {dimension_numbers = #tpu.dot_dimension_numbers<[2], [2], [1], [1], [0, 0, 0, 1, 1, 1], [0], [0]>} : vector<2x8x16xbf16>, vector<2x8x16xbf16>, vector<2x8x8xf32> -> vector<2x8x8xf32>
    "tpu.trace_stop"() : () -> ()
    %cst_66 = arith.constant 2.500000e-01 : f32
    %222 = vector.broadcast %cst_66 : f32 to vector<2x8x8xf32>
    %223 = arith.mulf %221, %222 : vector<2x8x8xf32>
    %224 = arith.addf %223, %27 : vector<2x8x8xf32>
    %cst_67 = arith.constant dense<0xFF800000> : vector<2x8xf32>
    %225 = vector.multi_reduction <maximumf>, %224, %cst_67 [2] : vector<2x8x8xf32> to vector<2x8xf32>
    %226 = vector.shape_cast %225 : vector<2x8xf32> to vector<2x8x1xf32>
    %227 = vector.broadcast %226 : vector<2x8x1xf32> to vector<2x8x8xf32>
    %228 = arith.subf %224, %227 : vector<2x8x8xf32>
    %229 = math.exp %228 : vector<2x8x8xf32>
    %cst_68 = arith.constant dense<0.000000e+00> : vector<2x8xf32>
    %230 = vector.multi_reduction <add>, %229, %cst_68 [2] : vector<2x8x8xf32> to vector<2x8xf32>
    %231 = vector.shape_cast %230 : vector<2x8xf32> to vector<2x8x1xf32>
    %232 = tpu.reciprocal %231 {approx = true} : vector<2x8x1xf32> -> vector<2x8x1xf32>
    %233 = vector.broadcast %232 : vector<2x8x1xf32> to vector<2x8x8xf32>
    %234 = arith.mulf %229, %233 : vector<2x8x8xf32>
    %235 = arith.truncf %234 : vector<2x8x8xf32> to vector<2x8x8xbf16>
    "tpu.trace_start"() <{level = 10 : i32, message = "bqk,bkd->bqd"}> : () -> ()
    %cst_69 = arith.constant dense<0.000000e+00> : vector<2x8x16xf32>
    %236 = tpu.matmul %235, %220, %cst_69 {dimension_numbers = #tpu.dot_dimension_numbers<[2], [1], [1], [2], [0, 0, 0, 1, 1, 2], [0], [0]>} : vector<2x8x8xbf16>, vector<2x8x16xbf16>, vector<2x8x16xf32> -> vector<2x8x16xf32>
    "tpu.trace_stop"() : () -> ()
    %237 = vector.shape_cast %236 : vector<2x8x16xf32> to vector<16x16xf32>
    %238 = arith.truncf %237 : vector<16x16xf32> to vector<16x16xbf16>
    %239 = vector.extract_strided_slice %180 {offsets = [16, 0], sizes = [16, 32], strides = [1, 1]} : vector<32x32xbf16> to vector<16x32xbf16>
    %cst_70 = arith.constant dense<0.000000e+00> : vector<16x32xf32>
    %240 = tpu.matmul %238, %239, %cst_70 {dimension_numbers = #tpu.dot_dimension_numbers<[1], [0], [0], [1], [0, 0, 1, 1], [], []>} : vector<16x16xbf16>, vector<16x32xbf16>, vector<16x32xf32> -> vector<16x32xf32>
    %241 = arith.addf %211, %240 : vector<16x32xf32>
    %c11 = arith.constant 11 : index
    %c0_71 = arith.constant 0 : index
    %242 = vector.load %arg4[%c11, %c0_71] : memref<24x128xf32, #tpu.memory_space<vmem>>, vector<1x32xf32>
    %243 = vector.broadcast %242 : vector<1x32xf32> to vector<16x32xf32>
    %244 = arith.addf %241, %243 : vector<16x32xf32>
    %245 = arith.addf %244, %173 : vector<16x32xf32>
    %c12 = arith.constant 12 : index
    %c0_72 = arith.constant 0 : index
    %246 = vector.load %arg4[%c12, %c0_72] : memref<24x128xf32, #tpu.memory_space<vmem>>, vector<1x32xf32>
    %c13 = arith.constant 13 : index
    %c0_73 = arith.constant 0 : index
    %247 = vector.load %arg4[%c13, %c0_73] : memref<24x128xf32, #tpu.memory_space<vmem>>, vector<1x32xf32>
    %cst_74 = arith.constant dense<0.000000e+00> : vector<16xf32>
    %248 = vector.multi_reduction <add>, %245, %cst_74 [1] : vector<16x32xf32> to vector<16xf32>
    %249 = vector.shape_cast %248 : vector<16xf32> to vector<16x1xf32>
    %cst_75 = arith.constant 3.200000e+01 : f32
    %250 = vector.broadcast %cst_75 : f32 to vector<16x1xf32>
    %251 = arith.divf %249, %250 : vector<16x1xf32>
    %252 = vector.broadcast %251 : vector<16x1xf32> to vector<16x32xf32>
    %253 = arith.subf %245, %252 : vector<16x32xf32>
    %254 = arith.mulf %253, %253 : vector<16x32xf32>
    %cst_76 = arith.constant dense<0.000000e+00> : vector<16xf32>
    %255 = vector.multi_reduction <add>, %254, %cst_76 [1] : vector<16x32xf32> to vector<16xf32>
    %256 = vector.shape_cast %255 : vector<16xf32> to vector<16x1xf32>
    %cst_77 = arith.constant 3.200000e+01 : f32
    %257 = vector.broadcast %cst_77 : f32 to vector<16x1xf32>
    %258 = arith.divf %256, %257 : vector<16x1xf32>
    %259 = vector.broadcast %251 : vector<16x1xf32> to vector<16x32xf32>
    %260 = arith.subf %245, %259 : vector<16x32xf32>
    %cst_78 = arith.constant 9.99999996E-13 : f32
    %261 = vector.broadcast %cst_78 : f32 to vector<16x1xf32>
    %262 = arith.addf %258, %261 : vector<16x1xf32>
    %263 = math.rsqrt %262 : vector<16x1xf32>
    %264 = vector.broadcast %263 : vector<16x1xf32> to vector<16x32xf32>
    %265 = arith.mulf %260, %264 : vector<16x32xf32>
    %266 = vector.broadcast %246 : vector<1x32xf32> to vector<16x32xf32>
    %267 = arith.mulf %265, %266 : vector<16x32xf32>
    %268 = vector.broadcast %247 : vector<1x32xf32> to vector<16x32xf32>
    %269 = arith.addf %267, %268 : vector<16x32xf32>
    %c224 = arith.constant 224 : index
    %c0_79 = arith.constant 0 : index
    %270 = vector.load %arg3[%c224, %c0_79] : memref<384x128xbf16, #tpu.memory_space<vmem>>, vector<32x64xbf16>
    %c14 = arith.constant 14 : index
    %c0_80 = arith.constant 0 : index
    %271 = vector.load %arg4[%c14, %c0_80] : memref<24x128xf32, #tpu.memory_space<vmem>>, vector<1x64xf32>
    %272 = arith.truncf %269 : vector<16x32xf32> to vector<16x32xbf16>
    %cst_81 = arith.constant dense<0.000000e+00> : vector<16x64xf32>
    %273 = tpu.matmul %272, %270, %cst_81 {dimension_numbers = #tpu.dot_dimension_numbers<[1], [0], [0], [1], [0, 0, 1, 1], [], []>} : vector<16x32xbf16>, vector<32x64xbf16>, vector<16x64xf32> -> vector<16x64xf32>
    %274 = vector.broadcast %271 : vector<1x64xf32> to vector<16x64xf32>
    %275 = arith.addf %273, %274 : vector<16x64xf32>
    %276 = arith.mulf %275, %275 : vector<16x64xf32>
    %277 = arith.mulf %275, %276 : vector<16x64xf32>
    %cst_82 = arith.constant 4.471500e-02 : f32
    %278 = vector.broadcast %cst_82 : f32 to vector<16x64xf32>
    %279 = arith.mulf %278, %277 : vector<16x64xf32>
    %280 = arith.addf %275, %279 : vector<16x64xf32>
    %cst_83 = arith.constant 0.797884583 : f32
    %281 = vector.broadcast %cst_83 : f32 to vector<16x64xf32>
    %282 = arith.mulf %281, %280 : vector<16x64xf32>
    %283 = math.tanh %282 : vector<16x64xf32>
    %cst_84 = arith.constant 1.000000e+00 : f32
    %284 = vector.broadcast %cst_84 : f32 to vector<16x64xf32>
    %285 = arith.addf %284, %283 : vector<16x64xf32>
    %cst_85 = arith.constant 5.000000e-01 : f32
    %286 = vector.broadcast %cst_85 : f32 to vector<16x64xf32>
    %287 = arith.mulf %286, %285 : vector<16x64xf32>
    %288 = arith.mulf %275, %287 : vector<16x64xf32>
    %c256 = arith.constant 256 : index
    %c0_86 = arith.constant 0 : index
    %289 = vector.load %arg3[%c256, %c0_86] : memref<384x128xbf16, #tpu.memory_space<vmem>>, vector<64x32xbf16>
    %c15 = arith.constant 15 : index
    %c0_87 = arith.constant 0 : index
    %290 = vector.load %arg4[%c15, %c0_87] : memref<24x128xf32, #tpu.memory_space<vmem>>, vector<1x32xf32>
    %291 = arith.truncf %288 : vector<16x64xf32> to vector<16x64xbf16>
    %cst_88 = arith.constant dense<0.000000e+00> : vector<16x32xf32>
    %292 = tpu.matmul %291, %289, %cst_88 {dimension_numbers = #tpu.dot_dimension_numbers<[1], [0], [0], [1], [0, 0, 1, 1], [], []>} : vector<16x64xbf16>, vector<64x32xbf16>, vector<16x32xf32> -> vector<16x32xf32>
    %293 = vector.broadcast %290 : vector<1x32xf32> to vector<16x32xf32>
    %294 = arith.addf %292, %293 : vector<16x32xf32>
    %295 = arith.addf %294, %269 : vector<16x32xf32>
    %c16 = arith.constant 16 : index
    %c0_89 = arith.constant 0 : index
    %296 = vector.load %arg4[%c16, %c0_89] : memref<24x128xf32, #tpu.memory_space<vmem>>, vector<1x32xf32>
    %c17 = arith.constant 17 : index
    %c0_90 = arith.constant 0 : index
    %297 = vector.load %arg4[%c17, %c0_90] : memref<24x128xf32, #tpu.memory_space<vmem>>, vector<1x32xf32>
    %cst_91 = arith.constant dense<0.000000e+00> : vector<16xf32>
    %298 = vector.multi_reduction <add>, %295, %cst_91 [1] : vector<16x32xf32> to vector<16xf32>
    %299 = vector.shape_cast %298 : vector<16xf32> to vector<16x1xf32>
    %cst_92 = arith.constant 3.200000e+01 : f32
    %300 = vector.broadcast %cst_92 : f32 to vector<16x1xf32>
    %301 = arith.divf %299, %300 : vector<16x1xf32>
    %302 = vector.broadcast %301 : vector<16x1xf32> to vector<16x32xf32>
    %303 = arith.subf %295, %302 : vector<16x32xf32>
    %304 = arith.mulf %303, %303 : vector<16x32xf32>
    %cst_93 = arith.constant dense<0.000000e+00> : vector<16xf32>
    %305 = vector.multi_reduction <add>, %304, %cst_93 [1] : vector<16x32xf32> to vector<16xf32>
    %306 = vector.shape_cast %305 : vector<16xf32> to vector<16x1xf32>
    %cst_94 = arith.constant 3.200000e+01 : f32
    %307 = vector.broadcast %cst_94 : f32 to vector<16x1xf32>
    %308 = arith.divf %306, %307 : vector<16x1xf32>
    %309 = vector.broadcast %301 : vector<16x1xf32> to vector<16x32xf32>
    %310 = arith.subf %295, %309 : vector<16x32xf32>
    %cst_95 = arith.constant 9.99999996E-13 : f32
    %311 = vector.broadcast %cst_95 : f32 to vector<16x1xf32>
    %312 = arith.addf %308, %311 : vector<16x1xf32>
    %313 = math.rsqrt %312 : vector<16x1xf32>
    %314 = vector.broadcast %313 : vector<16x1xf32> to vector<16x32xf32>
    %315 = arith.mulf %310, %314 : vector<16x32xf32>
    %316 = vector.broadcast %296 : vector<1x32xf32> to vector<16x32xf32>
    %317 = arith.mulf %315, %316 : vector<16x32xf32>
    %318 = vector.broadcast %297 : vector<1x32xf32> to vector<16x32xf32>
    %319 = arith.addf %317, %318 : vector<16x32xf32>
    %320 = vector.shape_cast %319 : vector<16x32xf32> to vector<2x8x32xf32>
    %321 = vector.extract_strided_slice %320 {offsets = [0, 0, 0], sizes = [2, 1, 32], strides = [1, 1, 1]} : vector<2x8x32xf32> to vector<2x1x32xf32>
    %322 = vector.shape_cast %321 : vector<2x1x32xf32> to vector<2x32xf32>
    %c320 = arith.constant 320 : index
    %c0_96 = arith.constant 0 : index
    %323 = vector.load %arg3[%c320, %c0_96] : memref<384x128xbf16, #tpu.memory_space<vmem>>, vector<32x32xbf16>
    %c18 = arith.constant 18 : index
    %c0_97 = arith.constant 0 : index
    %324 = vector.load %arg4[%c18, %c0_97] : memref<24x128xf32, #tpu.memory_space<vmem>>, vector<1x32xf32>
    %325 = arith.truncf %322 : vector<2x32xf32> to vector<2x32xbf16>
    %cst_98 = arith.constant dense<0.000000e+00> : vector<2x32xf32>
    %326 = tpu.matmul %325, %323, %cst_98 {dimension_numbers = #tpu.dot_dimension_numbers<[1], [0], [0], [1], [0, 0, 1, 1], [], []>} : vector<2x32xbf16>, vector<32x32xbf16>, vector<2x32xf32> -> vector<2x32xf32>
    %327 = vector.broadcast %324 : vector<1x32xf32> to vector<2x32xf32>
    %328 = arith.addf %326, %327 : vector<2x32xf32>
    %329 = math.tanh %328 : vector<2x32xf32>
    %c352 = arith.constant 352 : index
    %c0_99 = arith.constant 0 : index
    %330 = vector.load %arg3[%c352, %c0_99] : memref<384x128xbf16, #tpu.memory_space<vmem>>, vector<32x128xbf16>
    %c19 = arith.constant 19 : index
    %c0_100 = arith.constant 0 : index
    %331 = vector.load %arg4[%c19, %c0_100] : memref<24x128xf32, #tpu.memory_space<vmem>>, vector<1x128xf32>
    %332 = arith.truncf %329 : vector<2x32xf32> to vector<2x32xbf16>
    %cst_101 = arith.constant dense<0.000000e+00> : vector<2x128xf32>
    %333 = tpu.matmul %332, %330, %cst_101 {dimension_numbers = #tpu.dot_dimension_numbers<[1], [0], [0], [1], [0, 0, 1, 1], [], []>} : vector<2x32xbf16>, vector<32x128xbf16>, vector<2x128xf32> -> vector<2x128xf32>
    %334 = vector.broadcast %331 : vector<1x128xf32> to vector<2x128xf32>
    %335 = arith.addf %333, %334 : vector<2x128xf32>
    %c0_102 = arith.constant 0 : index
    %c0_103 = arith.constant 0 : index
    %336 = vector.load %arg5[%c0_102, %c0_103] : memref<2x128xf32, #tpu.memory_space<vmem>>, vector<2x128xf32>
    tpu.vector_store %arg5[%c0_102, %c0_103], %335 {strides = array<i32>} : memref<2x128xf32, #tpu.memory_space<vmem>>, vector<2x128xf32>,
    return
  }
  func.func @transform_0(%arg0: i32) -> (i32, i32) {
    %c0_i32 = arith.constant 0 : i32
    %c0_i32_0 = arith.constant 0 : i32
    %c0_i32_1 = arith.constant 0 : i32
    return %c0_i32, %c0_i32_0 : i32, i32
  }
  func.func @transform_1(%arg0: i32) -> (i32, i32, i32) {
    %c0_i32 = arith.constant 0 : i32
    %c0_i32_0 = arith.constant 0 : i32
    %c0_i32_1 = arith.constant 0 : i32
    %c0_i32_2 = arith.constant 0 : i32
    return %c0_i32, %c0_i32_0, %c0_i32_1 : i32, i32, i32
  }
  func.func @transform_2(%arg0: i32) -> (i32, i32) {
    %c0_i32 = arith.constant 0 : i32
    %c0_i32_0 = arith.constant 0 : i32
    %c0_i32_1 = arith.constant 0 : i32
    return %c0_i32, %c0_i32_0 : i32, i32
  }
  func.func @transform_3(%arg0: i32) -> (i32, i32) {
    %c0_i32 = arith.constant 0 : i32
    %c0_i32_0 = arith.constant 0 : i32
    %c0_i32_1 = arith.constant 0 : i32
    return %c0_i32, %c0_i32_0 : i32, i32
  }
  func.func @transform_4(%arg0: i32) -> (i32, i32) {
    %c0_i32 = arith.constant 0 : i32
    %c0_i32_0 = arith.constant 0 : i32
    %c0_i32_1 = arith.constant 0 : i32
    return %c0_i32, %c0_i32_0 : i32, i32
  }
}

</mosaic_0001>

<llo_original>
// kernel: tpu_custom_call.1
$region0: #{tpu_custom_call.1}
  #allocation0 [shape = 'u32[]', space=smem, size = 0x4, offset = 0x4, fixed_abs, tag = 'smem constant byte address 0x4 - core index']
  #allocation1 [shape = 'u32[144,128]{1,0:T(1,128)}', space=vmem, size = 0x12000, scoped, tag = 'internal scratch']
  %s0 = inlined_call_operand.hbm [shape: f32[16,32], index: 0, kind: input, shape index: {}]
  %s1 = inlined_call_operand.vmem [shape: f32[2,1,8], index: 1, kind: input, shape index: {}]
  %s2 = inlined_call_operand.hbm [shape: bf16[384,128], index: 2, kind: input, shape index: {}]
  %s3 = inlined_call_operand.hbm [shape: f32[24,128], index: 3, kind: input, shape index: {}]
  %s4 = inlined_call_operand.hbm [shape: f32[2,128], index: 4, kind: output, shape index: {}]
  %s5 = sld [smem:[#allocation0]]
  $region38: #{tpu_custom_call.1} parent=0
    _
  %s7 = ssub.s32 1, %s5
  %s8 = scalar_select 0, %s7, %s5
  $region1: #{tpu_custom_call.1} parent=0
    #allocation2 [shape = 'u8[8192]{0}', space=vmem, size = 0x2000, scoped, tag = 'input window, operand 0, single buffered']
    #allocation3 [shape = 's32[1]{0}', space=sflag, size = 0x4, scoped, tag = 'scoped memory for tpu_custom_call.1']
    #allocation4 [shape = 's32[1]{0}', space=sflag, size = 0x4, scoped, tag = 'scoped memory for tpu_custom_call.1']
    #allocation5 [shape = 'u8[98304]{0}', space=vmem, size = 0x18000, scoped, tag = 'input window, operand 2, single buffered']
    #allocation6 [shape = 's32[1]{0}', space=sflag, size = 0x4, scoped, tag = 'scoped memory for tpu_custom_call.1']
    #allocation7 [shape = 'u8[12288]{0}', space=vmem, size = 0x3000, scoped, tag = 'input window, operand 3, single buffered']
    #allocation8 [shape = 'u8[1024]{0}', space=vmem, size = 0x400, scoped, tag = 'output window, operand 0, single buffered']
    %9 = vsyncpa [#allocation3], 0
    %10 = vsyncpa [#allocation6], 0
    %11 = vsyncpa [#allocation4], 0
    // Predicated region
    $region2: #{tpu_custom_call.1} parent=1 // pred_check
      _
    $region3: #{tpu_custom_call.1} parent=1 // pred_check_branch
      %13 = sbr.rel (0) target = $region5
    $region4: #{tpu_custom_call.1} parent=1 // pred_region
      %s15 = ssub.s32 256, 256
      %16 = vsyncadd [#allocation3], %s15
      %s17 = sshll.u32 [#allocation2], 4
      %s18 = int_to_ptr.vmem [resolvable:$true] %s17
      %23 = dma.hbm_to_vmem [thread:$0]  %s0, 256, %s18, [#allocation3], 128, 128, 8
    $region5: #{tpu_custom_call.1} parent=1 // pred_fallthru
      _
    // Predicated region
    $region6: #{tpu_custom_call.1} parent=1 // pred_check
      _
    $region7: #{tpu_custom_call.1} parent=1 // pred_check_branch
      %25 = sbr.rel (0) target = $region9
    $region8: #{tpu_custom_call.1} parent=1 // pred_region
      _
    $region9: #{tpu_custom_call.1} parent=1 // pred_fallthru
      _
    // Predicated region
    $region10: #{tpu_custom_call.1} parent=1 // pred_check
      _
    $region11: #{tpu_custom_call.1} parent=1 // pred_check_branch
      %27 = sbr.rel (0) target = $region13
    $region12: #{tpu_custom_call.1} parent=1 // pred_region
      %s29 = ssub.s32 3072, 3072
      %30 = vsyncadd [#allocation6], %s29
      %s31 = sshll.u32 [#allocation5], 4
      %s32 = int_to_ptr.vmem [resolvable:$true] %s31
      %37 = dma.hbm_to_vmem [thread:$0]  %s2, 3072, %s32, [#allocation6], 64, 64, 4
    $region13: #{tpu_custom_call.1} parent=1 // pred_fallthru
      _
    // Predicated region
    $region14: #{tpu_custom_call.1} parent=1 // pred_check
      _
    $region15: #{tpu_custom_call.1} parent=1 // pred_check_branch
      %39 = sbr.rel (0) target = $region17
    $region16: #{tpu_custom_call.1} parent=1 // pred_region
      %s41 = ssub.s32 384, 384
      %42 = vsyncadd [#allocation6], %s41
      %s43 = sshll.u32 [#allocation7], 4
      %s44 = int_to_ptr.vmem [resolvable:$true] %s43
      %49 = dma.hbm_to_vmem [thread:$0]  %s3, 384, %s44, [#allocation6], 128, 128, 8
    $region17: #{tpu_custom_call.1} parent=1 // pred_fallthru
      _
    // Predicated region
    $region18: #{tpu_custom_call.1} parent=1 // pred_check
      _
    $region19: #{tpu_custom_call.1} parent=1 // pred_check_branch
      %51 = sbr.rel (0) target = $region21
    $region20: #{tpu_custom_call.1} parent=1 // pred_region
      %52 = dma.done [#allocation3], 256
    $region21: #{tpu_custom_call.1} parent=1 // pred_fallthru
      _
    // Predicated region
    $region22: #{tpu_custom_call.1} parent=1 // pred_check
      _
    $region23: #{tpu_custom_call.1} parent=1 // pred_check_branch
      %54 = sbr.rel (0) target = $region25
    $region24: #{tpu_custom_call.1} parent=1 // pred_region
      %55 = dma.done [#allocation6], 3072
    $region25: #{tpu_custom_call.1} parent=1 // pred_fallthru
      _
    // Predicated region
    $region26: #{tpu_custom_call.1} parent=1 // pred_check
      _
    $region27: #{tpu_custom_call.1} parent=1 // pred_check_branch
      %57 = sbr.rel (0) target = $region29
    $region28: #{tpu_custom_call.1} parent=1 // pred_region
      %58 = dma.done [#allocation6], 384
    $region29: #{tpu_custom_call.1} parent=1 // pred_fallthru
      _
    %v60 = vld [vmem:[#allocation2] sm:$0xff]
    %v61 = vld [vmem:[#allocation2 + $0x8] sm:$0xff]
    %v62 = vld [vmem:[#allocation7] sm:$0x1]
    %v63 = vld [vmem:[#allocation7 + $0x1] sm:$0x1]
    %vm64 = vcmask 261120
    %v65 = vsel %vm64, %v60, 0.0
    %66 = vadd.xlane.f32.xlu0 %v65
    %v67 = vpop.xlane.xlu0 %66
    %v68 = vsel %vm64, %v61, 0.0
    %69 = vadd.xlane.f32.xlu0 %v68
    %v70 = vpop.xlane.xlu0 %69
    %v71 = vrcp.pop 32.0
    %v72 = vmul.f32 %v67, %v71
    %v73 = vmul.f32 %v70, %v71
    %v74 = vsub.f32 %v60, %v72
    %v75 = vsub.f32 %v61, %v73
    %v76 = vmul.f32 %v74, %v74
    %v77 = vmul.f32 %v75, %v75
    %v78 = vsel %vm64, %v76, 0.0
    %79 = vadd.xlane.f32.xlu0 %v78
    %v80 = vpop.xlane.xlu0 %79
    %v81 = vsel %vm64, %v77, 0.0
    %82 = vadd.xlane.f32.xlu0 %v81
    %v83 = vpop.xlane.xlu0 %82
    %v84 = vmul.f32 %v80, %v71
    %v85 = vmul.f32 %v83, %v71
    %v86 = vadd.f32 %v84, 1e-12
    %v87 = vadd.f32 %v85, 1e-12
    %v88 = vrsqrt.pop %v86
    %v89 = vrsqrt.pop %v87
    %v90 = vmul.f32 %v74, %v88
    %v91 = vmul.f32 %v75, %v89
    %v92 = vlaneseq
    %v93 = vshrl.u32 %v92, 7
    %v94 = vsub.s32 0, %v93
    %v95 = vrot.slane %v62, %v94
    %v96 = vmul.f32 %v90, %v95
    %v97 = vmul.f32 %v91, %v95
    %v98 = vlaneseq
    %v99 = vshrl.u32 %v98, 7
    %v100 = vsub.s32 0, %v99
    %v101 = vrot.slane %v63, %v100
    %v102 = vadd.f32 %v96, %v101
    %v103 = vadd.f32 %v97, %v101
    %v104 = vld [vmem:[%s1] sm:$0x1]
    %v105 = vld [vmem:[%s1 + $0x1] sm:$0x1]
    %v108 = vlaneseq
    %v109 = vshrl.u32 %v108, 7
    %v110 = vsub.s32 0, %v109
    %v111 = vrot.slane %v104, %v110
    %v112 = vlaneseq
    %v113 = vshrl.u32 %v112, 7
    %v114 = vsub.s32 0, %v113
    %v115 = vrot.slane %v105, %v114
    %v118 = vld [vmem:[#allocation5] sm:$0xf]
    %v119 = vld [vmem:[#allocation5 + $0x4] sm:$0xf]
    %v120 = vld [vmem:[#allocation5 + $0x8] sm:$0xf]
    %v121 = vld [vmem:[#allocation5 + $0xc] sm:$0xf]
    %v122 = vld [vmem:[#allocation7 + $0x2] sm:$0x1]
    %v123 = vpack.c.bf16 %v103, %v102
    %v124 = vlaneseq
    %v125 = vshrl.u32 %v124, 7
    %v126 = vsub.s32 0, %v125
    %v127 = vrot.slane %v122, %v126
    %v132 = vunpack.c.l.b16 %v118
    %v133 = vunpack.c.l.b16 %v119
    %v134 = vunpack.c.l.b16 %v120
    %v135 = vunpack.c.l.b16 %v121
    %v136 = vpack.c.b16 %v133, %v132
    %v137 = vpack.c.b16 %v135, %v134
    %v141 = vsel %vm64, %v123, 0
    %143 = vmatprep.subr.bf16.mxu0 0
    %144 = vmatpush1.bf16.msra.mxu0 %v136
    %145 = vmatprep.subr.bf16.mxu0 0
    %146 = vmatpush1.bf16.msra.mxu0 %v137
    %147 = vmatprep.subr.bf16.mxu0 0
    %148 = vmatpush1.bf16.msra.mxu0 0
    %149 = vmatprep.subr.bf16.mxu0 0
    %150 = vmatpush1.bf16.msra.mxu0 0
    %151 = vmatprep.subr.bf16.mxu0 0
    %152 = vmatpush1.bf16.msra.mxu0 0
    %153 = vmatprep.subr.bf16.mxu0 0
    %154 = vmatpush1.bf16.msra.mxu0 0
    %155 = vmatprep.subr.bf16.mxu0 0
    %156 = vmatpush1.bf16.msra.mxu0 0
    %157 = vmatprep.subr.bf16.mxu0 0
    %158 = vmatpush1.bf16.msra.mxu0 0
    %159 = vmatprep.subr.bf16.mxu0 0
    %160 = vmatpush1.bf16.msra.mxu0 0
    %161 = vmatprep.subr.bf16.mxu0 0
    %162 = vmatpush1.bf16.msra.mxu0 0
    %163 = vmatprep.subr.bf16.mxu0 0
    %164 = vmatpush1.bf16.msra.mxu0 0
    %165 = vmatprep.subr.bf16.mxu0 0
    %166 = vmatpush1.bf16.msra.mxu0 0
    %167 = vmatprep.subr.bf16.mxu0 0
    %168 = vmatpush1.bf16.msra.mxu0 0
    %169 = vmatprep.subr.bf16.mxu0 0
    %170 = vmatpush1.bf16.msra.mxu0 0
    %171 = vmatprep.subr.bf16.mxu0 0
    %172 = vmatpush1.bf16.msra.mxu0 0
    %173 = vmatprep.subr.bf16.mxu0 0
    %174 = vmatpush1.bf16.msra.mxu0 0
    %175 = vmatprep.mubr.bf16.mxu0 0
    %176 = vmatmul.mubr.bf16.gmra.mrb[0].mxu0 %v141
    %v177 = vpop.f32.mrb[0].mxu0
    %v178 = vadd.f32 %v127, %v177
    %v179 = vpop.f32.mrb[0].mxu0
    %v180 = vpop.f32.mrb[0].mxu0
    %v181 = vadd.f32 %v127, %v180
    %v182 = vpop.f32.mrb[0].mxu0
    %183 = vdwg.mxu0
    %v184 = vld [vmem:[#allocation5 + $0x10] sm:$0xf]
    %v185 = vld [vmem:[#allocation5 + $0x14] sm:$0xf]
    %v186 = vld [vmem:[#allocation5 + $0x18] sm:$0xf]
    %v187 = vld [vmem:[#allocation5 + $0x1c] sm:$0xf]
    %v188 = vpack.c.bf16 %v181, %v178
    %v190 = vunpack.c.l.b16 %v188
    %v191 = vunpack.c.h.b16 %v188
    %v192 = vpack.c.b16 %v190, %v190
    %v193 = vpack.c.b16 %v191, %v191
    %194 = vrot.lane.b32.xlu0 %v192, 96
    %v195 = vpop.permute.xlu0 %194
    %vm196 = vcmask 130048
    %v198 = vsel %vm196, %v192, 0
    %v201 = vsel %vm196, %v195, 0
    %203 = vmatprep.subr.bf16.mxu0 0
    %204 = vmatpush1.bf16.xpose.msra.mxu0 %v201
    %205 = vmatprep.subr.bf16.mxu0 0
    %206 = vmatpush1.bf16.xpose.msra.mxu0 0
    %207 = vmatprep.subr.bf16.mxu0 0
    %208 = vmatpush1.bf16.xpose.msra.mxu0 0
    %209 = vmatprep.subr.bf16.mxu0 0
    %210 = vmatpush1.bf16.xpose.msra.mxu0 0
    %211 = vmatprep.subr.bf16.mxu0 0
    %212 = vmatpush1.bf16.xpose.msra.mxu0 0
    %213 = vmatprep.subr.bf16.mxu0 0
    %214 = vmatpush1.bf16.xpose.msra.mxu0 0
    %215 = vmatprep.subr.bf16.mxu0 0
    %216 = vmatpush1.bf16.xpose.msra.mxu0 0
    %217 = vmatprep.subr.bf16.mxu0 0
    %218 = vmatpush1.bf16.xpose.msra.mxu0 0
    %219 = vmatprep.subr.bf16.mxu0 0
    %220 = vmatpush1.bf16.xpose.msra.mxu0 0
    %221 = vmatprep.subr.bf16.mxu0 0
    %222 = vmatpush1.bf16.xpose.msra.mxu0 0
    %223 = vmatprep.subr.bf16.mxu0 0
    %224 = vmatpush1.bf16.xpose.msra.mxu0 0
    %225 = vmatprep.subr.bf16.mxu0 0
    %226 = vmatpush1.bf16.xpose.msra.mxu0 0
    %227 = vmatprep.subr.bf16.mxu0 0
    %228 = vmatpush1.bf16.xpose.msra.mxu0 0
    %229 = vmatprep.subr.bf16.mxu0 0
    %230 = vmatpush1.bf16.xpose.msra.mxu0 0
    %231 = vmatprep.subr.bf16.mxu0 0
    %232 = vmatpush1.bf16.xpose.msra.mxu0 0
    %233 = vmatprep.subr.bf16.mxu0 0
    %234 = vmatpush1.bf16.xpose.msra.mxu0 0
    %235 = vmatprep.mubr.bf16.mxu0 0
    %236 = vmatmul.mubr.bf16.gmra.mrb[0].mxu0 %v198
    %v237 = vpop.f32.mrb[0].mxu0
    %v238 = vadd.f32 0.0, %v237
    %v239 = vpop.f32.mrb[0].mxu0
    %v240 = vpop.f32.mrb[0].mxu0
    %v241 = vpop.f32.mrb[0].mxu0
    %242 = vdwg.mxu0
    %243 = vrot.lane.b32.xlu0 %v193, 96
    %v244 = vpop.permute.xlu0 %243
    %v246 = vsel %vm196, %v193, 0
    %v249 = vsel %vm196, %v244, 0
    %251 = vmatprep.subr.bf16.mxu0 0
    %252 = vmatpush1.bf16.xpose.msra.mxu0 %v249
    %253 = vmatprep.subr.bf16.mxu0 0
    %254 = vmatpush1.bf16.xpose.msra.mxu0 0
    %255 = vmatprep.subr.bf16.mxu0 0
    %256 = vmatpush1.bf16.xpose.msra.mxu0 0
    %257 = vmatprep.subr.bf16.mxu0 0
    %258 = vmatpush1.bf16.xpose.msra.mxu0 0
    %259 = vmatprep.subr.bf16.mxu0 0
    %260 = vmatpush1.bf16.xpose.msra.mxu0 0
    %261 = vmatprep.subr.bf16.mxu0 0
    %262 = vmatpush1.bf16.xpose.msra.mxu0 0
    %263 = vmatprep.subr.bf16.mxu0 0
    %264 = vmatpush1.bf16.xpose.msra.mxu0 0
    %265 = vmatprep.subr.bf16.mxu0 0
    %266 = vmatpush1.bf16.xpose.msra.mxu0 0
    %267 = vmatprep.subr.bf16.mxu0 0
    %268 = vmatpush1.bf16.xpose.msra.mxu0 0
    %269 = vmatprep.subr.bf16.mxu0 0
    %270 = vmatpush1.bf16.xpose.msra.mxu0 0
    %271 = vmatprep.subr.bf16.mxu0 0
    %272 = vmatpush1.bf16.xpose.msra.mxu0 0
    %273 = vmatprep.subr.bf16.mxu0 0
    %274 = vmatpush1.bf16.xpose.msra.mxu0 0
    %275 = vmatprep.subr.bf16.mxu0 0
    %276 = vmatpush1.bf16.xpose.msra.mxu0 0
    %277 = vmatprep.subr.bf16.mxu0 0
    %278 = vmatpush1.bf16.xpose.msra.mxu0 0
    %279 = vmatprep.subr.bf16.mxu0 0
    %280 = vmatpush1.bf16.xpose.msra.mxu0 0
    %281 = vmatprep.subr.bf16.mxu0 0
    %282 = vmatpush1.bf16.xpose.msra.mxu0 0
    %283 = vmatprep.mubr.bf16.mxu0 0
    %284 = vmatmul.mubr.bf16.gmra.mrb[0].mxu0 %v246
    %v285 = vpop.f32.mrb[0].mxu0
    %v286 = vadd.f32 0.0, %v285
    %v287 = vpop.f32.mrb[0].mxu0
    %v288 = vpop.f32.mrb[0].mxu0
    %v289 = vpop.f32.mrb[0].mxu0
    %290 = vdwg.mxu0
    %v291 = vmul.f32 %v238, 0.25
    %v292 = vmul.f32 %v286, 0.25
    %v293 = vadd.f32 %v291, %v111
    %v294 = vadd.f32 %v292, %v115
    %vm295 = vcmask 64512
    %v296 = vsel %vm295, %v293, -inf
    %297 = vmax.xlane.f32.xlu0 %v296
    %v298 = vpop.xlane.xlu0 %297
    %v299 = vsel %vm295, %v294, -inf
    %300 = vmax.xlane.f32.xlu0 %v299
    %v301 = vpop.xlane.xlu0 %300
    %v302 = vsub.f32 %v293, %v298
    %v303 = vsub.f32 %v294, %v301
    %v304 = vmul.f32 %v302, 1.442695
    %v305 = vpow.pop %v304
    %v306 = vmul.f32 %v303, 1.442695
    %v307 = vpow.pop %v306
    %v308 = vsel %vm295, %v305, 0.0
    %309 = vadd.xlane.f32.xlu0 %v308
    %v310 = vpop.xlane.xlu0 %309
    %v311 = vsel %vm295, %v307, 0.0
    %312 = vadd.xlane.f32.xlu0 %v311
    %v313 = vpop.xlane.xlu0 %312
    %v314 = vrcp.pop %v310
    %v315 = vrcp.pop %v313
    %v316 = vmul.f32 %v305, %v314
    %v317 = vmul.f32 %v307, %v315
    %v318 = vpack.c.bf16 %v316, %v316
    %v319 = vpack.c.bf16 %v317, %v317
    %320 = vrot.lane.b32.xlu0 %v192, 64
    %v321 = vpop.permute.xlu0 %320
    %v323 = vsel %vm295, %v318, 0
    %vm325 = vcmask 1043456
    %v327 = vsel %vm325, %v321, 0
    %329 = vmatprep.subr.bf16.mxu0 0
    %330 = vmatpush1.bf16.msra.mxu0 %v327
    %331 = vmatprep.subr.bf16.mxu0 0
    %332 = vmatpush1.bf16.msra.mxu0 0
    %333 = vmatprep.subr.bf16.mxu0 0
    %334 = vmatpush1.bf16.msra.mxu0 0
    %335 = vmatprep.subr.bf16.mxu0 0
    %336 = vmatpush1.bf16.msra.mxu0 0
    %337 = vmatprep.subr.bf16.mxu0 0
    %338 = vmatpush1.bf16.msra.mxu0 0
    %339 = vmatprep.subr.bf16.mxu0 0
    %340 = vmatpush1.bf16.msra.mxu0 0
    %341 = vmatprep.subr.bf16.mxu0 0
    %342 = vmatpush1.bf16.msra.mxu0 0
    %343 = vmatprep.subr.bf16.mxu0 0
    %344 = vmatpush1.bf16.msra.mxu0 0
    %345 = vmatprep.subr.bf16.mxu0 0
    %346 = vmatpush1.bf16.msra.mxu0 0
    %347 = vmatprep.subr.bf16.mxu0 0
    %348 = vmatpush1.bf16.msra.mxu0 0
    %349 = vmatprep.subr.bf16.mxu0 0
    %350 = vmatpush1.bf16.msra.mxu0 0
    %351 = vmatprep.subr.bf16.mxu0 0
    %352 = vmatpush1.bf16.msra.mxu0 0
    %353 = vmatprep.subr.bf16.mxu0 0
    %354 = vmatpush1.bf16.msra.mxu0 0
    %355 = vmatprep.subr.bf16.mxu0 0
    %356 = vmatpush1.bf16.msra.mxu0 0
    %357 = vmatprep.subr.bf16.mxu0 0
    %358 = vmatpush1.bf16.msra.mxu0 0
    %359 = vmatprep.subr.bf16.mxu0 0
    %360 = vmatpush1.bf16.msra.mxu0 0
    %361 = vmatprep.mubr.bf16.mxu0 0
    %362 = vmatmul.mubr.bf16.gmra.mrb[0].mxu0 %v323
    %v363 = vpop.f32.mrb[0].mxu0
    %v364 = vadd.f32 0.0, %v363
    %v365 = vpop.f32.mrb[0].mxu0
    %v366 = vpop.f32.mrb[0].mxu0
    %v367 = vpop.f32.mrb[0].mxu0
    %368 = vdwg.mxu0
    %369 = vrot.lane.b32.xlu0 %v193, 64
    %v370 = vpop.permute.xlu0 %369
    %v372 = vsel %vm295, %v319, 0
    %v375 = vsel %vm325, %v370, 0
    %377 = vmatprep.subr.bf16.mxu0 0
    %378 = vmatpush1.bf16.msra.mxu0 %v375
    %379 = vmatprep.subr.bf16.mxu0 0
    %380 = vmatpush1.bf16.msra.mxu0 0
    %381 = vmatprep.subr.bf16.mxu0 0
    %382 = vmatpush1.bf16.msra.mxu0 0
    %383 = vmatprep.subr.bf16.mxu0 0
    %384 = vmatpush1.bf16.msra.mxu0 0
    %385 = vmatprep.subr.bf16.mxu0 0
    %386 = vmatpush1.bf16.msra.mxu0 0
    %387 = vmatprep.subr.bf16.mxu0 0
    %388 = vmatpush1.bf16.msra.mxu0 0
    %389 = vmatprep.subr.bf16.mxu0 0
    %390 = vmatpush1.bf16.msra.mxu0 0
    %391 = vmatprep.subr.bf16.mxu0 0
    %392 = vmatpush1.bf16.msra.mxu0 0
    %393 = vmatprep.subr.bf16.mxu0 0
    %394 = vmatpush1.bf16.msra.mxu0 0
    %395 = vmatprep.subr.bf16.mxu0 0
    %396 = vmatpush1.bf16.msra.mxu0 0
    %397 = vmatprep.subr.bf16.mxu0 0
    %398 = vmatpush1.bf16.msra.mxu0 0
    %399 = vmatprep.subr.bf16.mxu0 0
    %400 = vmatpush1.bf16.msra.mxu0 0
    %401 = vmatprep.subr.bf16.mxu0 0
    %402 = vmatpush1.bf16.msra.mxu0 0
    %403 = vmatprep.subr.bf16.mxu0 0
    %404 = vmatpush1.bf16.msra.mxu0 0
    %405 = vmatprep.subr.bf16.mxu0 0
    %406 = vmatpush1.bf16.msra.mxu0 0
    %407 = vmatprep.subr.bf16.mxu0 0
    %408 = vmatpush1.bf16.msra.mxu0 0
    %409 = vmatprep.mubr.bf16.mxu0 0
    %410 = vmatmul.mubr.bf16.gmra.mrb[0].mxu0 %v372
    %v411 = vpop.f32.mrb[0].mxu0
    %v412 = vadd.f32 0.0, %v411
    %v413 = vpop.f32.mrb[0].mxu0
    %v414 = vpop.f32.mrb[0].mxu0
    %v415 = vpop.f32.mrb[0].mxu0
    %416 = vdwg.mxu0
    %v417 = vpack.c.bf16 %v412, %v364
    %418 = vrot.lane.b32.xlu0 %v192, 112
    %v419 = vpop.permute.xlu0 %418
    %420 = vrot.lane.b32.xlu0 %v192, 80
    %v421 = vpop.permute.xlu0 %420
    %v423 = vsel %vm196, %v419, 0
    %v426 = vsel %vm196, %v421, 0
    %428 = vmatprep.subr.bf16.mxu0 0
    %429 = vmatpush1.bf16.xpose.msra.mxu0 %v426
    %430 = vmatprep.subr.bf16.mxu0 0
    %431 = vmatpush1.bf16.xpose.msra.mxu0 0
    %432 = vmatprep.subr.bf16.mxu0 0
    %433 = vmatpush1.bf16.xpose.msra.mxu0 0
    %434 = vmatprep.subr.bf16.mxu0 0
    %435 = vmatpush1.bf16.xpose.msra.mxu0 0
    %436 = vmatprep.subr.bf16.mxu0 0
    %437 = vmatpush1.bf16.xpose.msra.mxu0 0
    %438 = vmatprep.subr.bf16.mxu0 0
    %439 = vmatpush1.bf16.xpose.msra.mxu0 0
    %440 = vmatprep.subr.bf16.mxu0 0
    %441 = vmatpush1.bf16.xpose.msra.mxu0 0
    %442 = vmatprep.subr.bf16.mxu0 0
    %443 = vmatpush1.bf16.xpose.msra.mxu0 0
    %444 = vmatprep.subr.bf16.mxu0 0
    %445 = vmatpush1.bf16.xpose.msra.mxu0 0
    %446 = vmatprep.subr.bf16.mxu0 0
    %447 = vmatpush1.bf16.xpose.msra.mxu0 0
    %448 = vmatprep.subr.bf16.mxu0 0
    %449 = vmatpush1.bf16.xpose.msra.mxu0 0
    %450 = vmatprep.subr.bf16.mxu0 0
    %451 = vmatpush1.bf16.xpose.msra.mxu0 0
    %452 = vmatprep.subr.bf16.mxu0 0
    %453 = vmatpush1.bf16.xpose.msra.mxu0 0
    %454 = vmatprep.subr.bf16.mxu0 0
    %455 = vmatpush1.bf16.xpose.msra.mxu0 0
    %456 = vmatprep.subr.bf16.mxu0 0
    %457 = vmatpush1.bf16.xpose.msra.mxu0 0
    %458 = vmatprep.subr.bf16.mxu0 0
    %459 = vmatpush1.bf16.xpose.msra.mxu0 0
    %460 = vmatprep.mubr.bf16.mxu0 0
    %461 = vmatmul.mubr.bf16.gmra.mrb[0].mxu0 %v423
    %v462 = vpop.f32.mrb[0].mxu0
    %v463 = vadd.f32 0.0, %v462
    %v464 = vpop.f32.mrb[0].mxu0
    %v465 = vpop.f32.mrb[0].mxu0
    %v466 = vpop.f32.mrb[0].mxu0
    %467 = vdwg.mxu0
    %468 = vrot.lane.b32.xlu0 %v193, 112
    %v469 = vpop.permute.xlu0 %468
    %470 = vrot.lane.b32.xlu0 %v193, 80
    %v471 = vpop.permute.xlu0 %470
    %v473 = vsel %vm196, %v469, 0
    %v476 = vsel %vm196, %v471, 0
    %478 = vmatprep.subr.bf16.mxu0 0
    %479 = vmatpush1.bf16.xpose.msra.mxu0 %v476
    %480 = vmatprep.subr.bf16.mxu0 0
    %481 = vmatpush1.bf16.xpose.msra.mxu0 0
    %482 = vmatprep.subr.bf16.mxu0 0
    %483 = vmatpush1.bf16.xpose.msra.mxu0 0
    %484 = vmatprep.subr.bf16.mxu0 0
    %485 = vmatpush1.bf16.xpose.msra.mxu0 0
    %486 = vmatprep.subr.bf16.mxu0 0
    %487 = vmatpush1.bf16.xpose.msra.mxu0 0
    %488 = vmatprep.subr.bf16.mxu0 0
    %489 = vmatpush1.bf16.xpose.msra.mxu0 0
    %490 = vmatprep.subr.bf16.mxu0 0
    %491 = vmatpush1.bf16.xpose.msra.mxu0 0
    %492 = vmatprep.subr.bf16.mxu0 0
    %493 = vmatpush1.bf16.xpose.msra.mxu0 0
    %494 = vmatprep.subr.bf16.mxu0 0
    %495 = vmatpush1.bf16.xpose.msra.mxu0 0
    %496 = vmatprep.subr.bf16.mxu0 0
    %497 = vmatpush1.bf16.xpose.msra.mxu0 0
    %498 = vmatprep.subr.bf16.mxu0 0
    %499 = vmatpush1.bf16.xpose.msra.mxu0 0
    %500 = vmatprep.subr.bf16.mxu0 0
    %501 = vmatpush1.bf16.xpose.msra.mxu0 0
    %502 = vmatprep.subr.bf16.mxu0 0
    %503 = vmatpush1.bf16.xpose.msra.mxu0 0
    %504 = vmatprep.subr.bf16.mxu0 0
    %505 = vmatpush1.bf16.xpose.msra.mxu0 0
    %506 = vmatprep.subr.bf16.mxu0 0
    %507 = vmatpush1.bf16.xpose.msra.mxu0 0
    %508 = vmatprep.subr.bf16.mxu0 0
    %509 = vmatpush1.bf16.xpose.msra.mxu0 0
    %510 = vmatprep.mubr.bf16.mxu0 0
    %511 = vmatmul.mubr.bf16.gmra.mrb[0].mxu0 %v473
    %v512 = vpop.f32.mrb[0].mxu0
    %v513 = vadd.f32 0.0, %v512
    %v514 = vpop.f32.mrb[0].mxu0
    %v515 = vpop.f32.mrb[0].mxu0
    %v516 = vpop.f32.mrb[0].mxu0
    %517 = vdwg.mxu0
    %v518 = vmul.f32 %v463, 0.25
    %v519 = vmul.f32 %v513, 0.25
    %v520 = vadd.f32 %v518, %v111
    %v521 = vadd.f32 %v519, %v115
    %v522 = vsel %vm295, %v520, -inf
    %523 = vmax.xlane.f32.xlu0 %v522
    %v524 = vpop.xlane.xlu0 %523
    %v525 = vsel %vm295, %v521, -inf
    %526 = vmax.xlane.f32.xlu0 %v525
    %v527 = vpop.xlane.xlu0 %526
    %v528 = vsub.f32 %v520, %v524
    %v529 = vsub.f32 %v521, %v527
    %v530 = vmul.f32 %v528, 1.442695
    %v531 = vpow.pop %v530
    %v532 = vmul.f32 %v529, 1.442695
    %v533 = vpow.pop %v532
    %v534 = vsel %vm295, %v531, 0.0
    %535 = vadd.xlane.f32.xlu0 %v534
    %v536 = vpop.xlane.xlu0 %535
    %v537 = vsel %vm295, %v533, 0.0
    %538 = vadd.xlane.f32.xlu0 %v537
    %v539 = vpop.xlane.xlu0 %538
    %v540 = vrcp.pop %v536
    %v541 = vrcp.pop %v539
    %v542 = vmul.f32 %v531, %v540
    %v543 = vmul.f32 %v533, %v541
    %v544 = vpack.c.bf16 %v542, %v542
    %v545 = vpack.c.bf16 %v543, %v543
    %546 = vrot.lane.b32.xlu0 %v192, 48
    %v547 = vpop.permute.xlu0 %546
    %v549 = vsel %vm295, %v544, 0
    %v552 = vsel %vm325, %v547, 0
    %554 = vmatprep.subr.bf16.mxu0 0
    %555 = vmatpush1.bf16.msra.mxu0 %v552
    %556 = vmatprep.subr.bf16.mxu0 0
    %557 = vmatpush1.bf16.msra.mxu0 0
    %558 = vmatprep.subr.bf16.mxu0 0
    %559 = vmatpush1.bf16.msra.mxu0 0
    %560 = vmatprep.subr.bf16.mxu0 0
    %561 = vmatpush1.bf16.msra.mxu0 0
    %562 = vmatprep.subr.bf16.mxu0 0
    %563 = vmatpush1.bf16.msra.mxu0 0
    %564 = vmatprep.subr.bf16.mxu0 0
    %565 = vmatpush1.bf16.msra.mxu0 0
    %566 = vmatprep.subr.bf16.mxu0 0
    %567 = vmatpush1.bf16.msra.mxu0 0
    %568 = vmatprep.subr.bf16.mxu0 0
    %569 = vmatpush1.bf16.msra.mxu0 0
    %570 = vmatprep.subr.bf16.mxu0 0
    %571 = vmatpush1.bf16.msra.mxu0 0
    %572 = vmatprep.subr.bf16.mxu0 0
    %573 = vmatpush1.bf16.msra.mxu0 0
    %574 = vmatprep.subr.bf16.mxu0 0
    %575 = vmatpush1.bf16.msra.mxu0 0
    %576 = vmatprep.subr.bf16.mxu0 0
    %577 = vmatpush1.bf16.msra.mxu0 0
    %578 = vmatprep.subr.bf16.mxu0 0
    %579 = vmatpush1.bf16.msra.mxu0 0
    %580 = vmatprep.subr.bf16.mxu0 0
    %581 = vmatpush1.bf16.msra.mxu0 0
    %582 = vmatprep.subr.bf16.mxu0 0
    %583 = vmatpush1.bf16.msra.mxu0 0
    %584 = vmatprep.subr.bf16.mxu0 0
    %585 = vmatpush1.bf16.msra.mxu0 0
    %586 = vmatprep.mubr.bf16.mxu0 0
    %587 = vmatmul.mubr.bf16.gmra.mrb[0].mxu0 %v549
    %v588 = vpop.f32.mrb[0].mxu0
    %v589 = vadd.f32 0.0, %v588
    %v590 = vpop.f32.mrb[0].mxu0
    %v591 = vpop.f32.mrb[0].mxu0
    %v592 = vpop.f32.mrb[0].mxu0
    %593 = vdwg.mxu0
    %594 = vrot.lane.b32.xlu0 %v193, 48
    %v595 = vpop.permute.xlu0 %594
    %v597 = vsel %vm295, %v545, 0
    %v600 = vsel %vm325, %v595, 0
    %602 = vmatprep.subr.bf16.mxu0 0
    %603 = vmatpush1.bf16.msra.mxu0 %v600
    %604 = vmatprep.subr.bf16.mxu0 0
    %605 = vmatpush1.bf16.msra.mxu0 0
    %606 = vmatprep.subr.bf16.mxu0 0
    %607 = vmatpush1.bf16.msra.mxu0 0
    %608 = vmatprep.subr.bf16.mxu0 0
    %609 = vmatpush1.bf16.msra.mxu0 0
    %610 = vmatprep.subr.bf16.mxu0 0
    %611 = vmatpush1.bf16.msra.mxu0 0
    %612 = vmatprep.subr.bf16.mxu0 0
    %613 = vmatpush1.bf16.msra.mxu0 0
    %614 = vmatprep.subr.bf16.mxu0 0
    %615 = vmatpush1.bf16.msra.mxu0 0
    %616 = vmatprep.subr.bf16.mxu0 0
    %617 = vmatpush1.bf16.msra.mxu0 0
    %618 = vmatprep.subr.bf16.mxu0 0
    %619 = vmatpush1.bf16.msra.mxu0 0
    %620 = vmatprep.subr.bf16.mxu0 0
    %621 = vmatpush1.bf16.msra.mxu0 0
    %622 = vmatprep.subr.bf16.mxu0 0
    %623 = vmatpush1.bf16.msra.mxu0 0
    %624 = vmatprep.subr.bf16.mxu0 0
    %625 = vmatpush1.bf16.msra.mxu0 0
    %626 = vmatprep.subr.bf16.mxu0 0
    %627 = vmatpush1.bf16.msra.mxu0 0
    %628 = vmatprep.subr.bf16.mxu0 0
    %629 = vmatpush1.bf16.msra.mxu0 0
    %630 = vmatprep.subr.bf16.mxu0 0
    %631 = vmatpush1.bf16.msra.mxu0 0
    %632 = vmatprep.subr.bf16.mxu0 0
    %633 = vmatpush1.bf16.msra.mxu0 0
    %634 = vmatprep.mubr.bf16.mxu0 0
    %635 = vmatmul.mubr.bf16.gmra.mrb[0].mxu0 %v597
    %v636 = vpop.f32.mrb[0].mxu0
    %v637 = vadd.f32 0.0, %v636
    %v638 = vpop.f32.mrb[0].mxu0
    %v639 = vpop.f32.mrb[0].mxu0
    %v640 = vpop.f32.mrb[0].mxu0
    %641 = vdwg.mxu0
    %v642 = vpack.c.bf16 %v637, %v589
    %v645 = vunpack.c.l.b16 %v186
    %v646 = vunpack.c.l.b16 %v187
    %v647 = vpack.c.b16 %v646, %v645
    %v650 = vsel %vm196, %v642, 0
    %652 = vmatprep.subr.bf16.mxu0 0
    %653 = vmatpush1.bf16.msra.mxu0 %v647
    %654 = vmatprep.subr.bf16.mxu0 0
    %655 = vmatpush1.bf16.msra.mxu0 0
    %656 = vmatprep.subr.bf16.mxu0 0
    %657 = vmatpush1.bf16.msra.mxu0 0
    %658 = vmatprep.subr.bf16.mxu0 0
    %659 = vmatpush1.bf16.msra.mxu0 0
    %660 = vmatprep.subr.bf16.mxu0 0
    %661 = vmatpush1.bf16.msra.mxu0 0
    %662 = vmatprep.subr.bf16.mxu0 0
    %663 = vmatpush1.bf16.msra.mxu0 0
    %664 = vmatprep.subr.bf16.mxu0 0
    %665 = vmatpush1.bf16.msra.mxu0 0
    %666 = vmatprep.subr.bf16.mxu0 0
    %667 = vmatpush1.bf16.msra.mxu0 0
    %668 = vmatprep.subr.bf16.mxu0 0
    %669 = vmatpush1.bf16.msra.mxu0 0
    %670 = vmatprep.subr.bf16.mxu0 0
    %671 = vmatpush1.bf16.msra.mxu0 0
    %672 = vmatprep.subr.bf16.mxu0 0
    %673 = vmatpush1.bf16.msra.mxu0 0
    %674 = vmatprep.subr.bf16.mxu0 0
    %675 = vmatpush1.bf16.msra.mxu0 0
    %676 = vmatprep.subr.bf16.mxu0 0
    %677 = vmatpush1.bf16.msra.mxu0 0
    %678 = vmatprep.subr.bf16.mxu0 0
    %679 = vmatpush1.bf16.msra.mxu0 0
    %680 = vmatprep.subr.bf16.mxu0 0
    %681 = vmatpush1.bf16.msra.mxu0 0
    %682 = vmatprep.subr.bf16.mxu0 0
    %683 = vmatpush1.bf16.msra.mxu0 0
    %684 = vmatprep.mubr.bf16.mxu0 0
    %685 = vmatmul.mubr.bf16.gmra.mrb[0].mxu0 %v650
    %v686 = vpop.f32.mrb[0].mxu0
    %v687 = vadd.f32 0.0, %v686
    %v688 = vpop.f32.mrb[0].mxu0
    %v689 = vpop.f32.mrb[0].mxu0
    %v690 = vadd.f32 0.0, %v689
    %v691 = vpop.f32.mrb[0].mxu0
    %692 = vdwg.mxu0
    %v695 = vunpack.c.l.b16 %v184
    %v696 = vunpack.c.l.b16 %v185
    %v697 = vpack.c.b16 %v696, %v695
    %v700 = vsel %vm196, %v417, 0
    %702 = vmatprep.subr.bf16.mxu0 0
    %703 = vmatpush1.bf16.msra.mxu0 %v697
    %704 = vmatprep.subr.bf16.mxu0 0
    %705 = vmatpush1.bf16.msra.mxu0 0
    %706 = vmatprep.subr.bf16.mxu0 0
    %707 = vmatpush1.bf16.msra.mxu0 0
    %708 = vmatprep.subr.bf16.mxu0 0
    %709 = vmatpush1.bf16.msra.mxu0 0
    %710 = vmatprep.subr.bf16.mxu0 0
    %711 = vmatpush1.bf16.msra.mxu0 0
    %712 = vmatprep.subr.bf16.mxu0 0
    %713 = vmatpush1.bf16.msra.mxu0 0
    %714 = vmatprep.subr.bf16.mxu0 0
    %715 = vmatpush1.bf16.msra.mxu0 0
    %716 = vmatprep.subr.bf16.mxu0 0
    %717 = vmatpush1.bf16.msra.mxu0 0
    %718 = vmatprep.subr.bf16.mxu0 0
    %719 = vmatpush1.bf16.msra.mxu0 0
    %720 = vmatprep.subr.bf16.mxu0 0
    %721 = vmatpush1.bf16.msra.mxu0 0
    %722 = vmatprep.subr.bf16.mxu0 0
    %723 = vmatpush1.bf16.msra.mxu0 0
    %724 = vmatprep.subr.bf16.mxu0 0
    %725 = vmatpush1.bf16.msra.mxu0 0
    %726 = vmatprep.subr.bf16.mxu0 0
    %727 = vmatpush1.bf16.msra.mxu0 0
    %728 = vmatprep.subr.bf16.mxu0 0
    %729 = vmatpush1.bf16.msra.mxu0 0
    %730 = vmatprep.subr.bf16.mxu0 0
    %731 = vmatpush1.bf16.msra.mxu0 0
    %732 = vmatprep.subr.bf16.mxu0 0
    %733 = vmatpush1.bf16.msra.mxu0 0
    %734 = vmatprep.mubr.bf16.mxu0 0
    %735 = vmatmul.mubr.bf16.gmra.mrb[0].mxu0 %v700
    %v736 = vpop.f32.mrb[0].mxu0
    %v737 = vadd.f32 %v687, %v736
    %v738 = vpop.f32.mrb[0].mxu0
    %v739 = vpop.f32.mrb[0].mxu0
    %v740 = vadd.f32 %v690, %v739
    %v741 = vpop.f32.mrb[0].mxu0
    %742 = vdwg.mxu0
    %v743 = vld [vmem:[#allocation7 + $0x3] sm:$0x1]
    %v744 = vlaneseq
    %v745 = vshrl.u32 %v744, 7
    %v746 = vsub.s32 0, %v745
    %v747 = vrot.slane %v743, %v746
    %v748 = vadd.f32 %v737, %v747
    %v749 = vadd.f32 %v740, %v747
    %v750 = vadd.f32 %v748, %v102
    %v751 = vadd.f32 %v749, %v103
    %v752 = vld [vmem:[#allocation7 + $0x4] sm:$0x1]
    %v753 = vld [vmem:[#allocation7 + $0x5] sm:$0x1]
    %v754 = vsel %vm64, %v750, 0.0
    %755 = vadd.xlane.f32.xlu0 %v754
    %v756 = vpop.xlane.xlu0 %755
    %v757 = vsel %vm64, %v751, 0.0
    %758 = vadd.xlane.f32.xlu0 %v757
    %v759 = vpop.xlane.xlu0 %758
    %v760 = vmul.f32 %v756, %v71
    %v761 = vmul.f32 %v759, %v71
    %v762 = vsub.f32 %v750, %v760
    %v763 = vsub.f32 %v751, %v761
    %v764 = vmul.f32 %v762, %v762
    %v765 = vmul.f32 %v763, %v763
    %v766 = vsel %vm64, %v764, 0.0
    %767 = vadd.xlane.f32.xlu0 %v766
    %v768 = vpop.xlane.xlu0 %767
    %v769 = vsel %vm64, %v765, 0.0
    %770 = vadd.xlane.f32.xlu0 %v769
    %v771 = vpop.xlane.xlu0 %770
    %v772 = vmul.f32 %v768, %v71
    %v773 = vmul.f32 %v771, %v71
    %v774 = vadd.f32 %v772, 1e-12
    %v775 = vadd.f32 %v773, 1e-12
    %v776 = vrsqrt.pop %v774
    %v777 = vrsqrt.pop %v775
    %v778 = vmul.f32 %v762, %v776
    %v779 = vmul.f32 %v763, %v777
    %v780 = vlaneseq
    %v781 = vshrl.u32 %v780, 7
    %v782 = vsub.s32 0, %v781
    %v783 = vrot.slane %v752, %v782
    %v784 = vmul.f32 %v778, %v783
    %v785 = vmul.f32 %v779, %v783
    %v786 = vlaneseq
    %v787 = vshrl.u32 %v786, 7
    %v788 = vsub.s32 0, %v787
    %v789 = vrot.slane %v753, %v788
    %v790 = vadd.f32 %v784, %v789
    %v791 = vadd.f32 %v785, %v789
    %v792 = vld [vmem:[#allocation5 + $0x20] sm:$0xf]
    %v793 = vld [vmem:[#allocation5 + $0x24] sm:$0xf]
    %v794 = vld [vmem:[#allocation5 + $0x28] sm:$0xf]
    %v795 = vld [vmem:[#allocation5 + $0x2c] sm:$0xf]
    %v796 = vld [vmem:[#allocation7 + $0x6] sm:$0x1]
    %v797 = vpack.c.bf16 %v791, %v790
    %v798 = vlaneseq
    %v799 = vshrl.u32 %v798, 7
    %v800 = vsub.s32 0, %v799
    %v801 = vrot.slane %v796, %v800
    %v806 = vunpack.c.l.b16 %v792
    %v807 = vunpack.c.l.b16 %v793
    %v808 = vunpack.c.l.b16 %v794
    %v809 = vunpack.c.l.b16 %v795
    %v810 = vpack.c.b16 %v807, %v806
    %v811 = vpack.c.b16 %v809, %v808
    %v815 = vsel %vm64, %v797, 0
    %817 = vmatprep.subr.bf16.mxu0 0
    %818 = vmatpush1.bf16.msra.mxu0 %v810
    %819 = vmatprep.subr.bf16.mxu0 0
    %820 = vmatpush1.bf16.msra.mxu0 %v811
    %821 = vmatprep.subr.bf16.mxu0 0
    %822 = vmatpush1.bf16.msra.mxu0 0
    %823 = vmatprep.subr.bf16.mxu0 0
    %824 = vmatpush1.bf16.msra.mxu0 0
    %825 = vmatprep.subr.bf16.mxu0 0
    %826 = vmatpush1.bf16.msra.mxu0 0
    %827 = vmatprep.subr.bf16.mxu0 0
    %828 = vmatpush1.bf16.msra.mxu0 0
    %829 = vmatprep.subr.bf16.mxu0 0
    %830 = vmatpush1.bf16.msra.mxu0 0
    %831 = vmatprep.subr.bf16.mxu0 0
    %832 = vmatpush1.bf16.msra.mxu0 0
    %833 = vmatprep.subr.bf16.mxu0 0
    %834 = vmatpush1.bf16.msra.mxu0 0
    %835 = vmatprep.subr.bf16.mxu0 0
    %836 = vmatpush1.bf16.msra.mxu0 0
    %837 = vmatprep.subr.bf16.mxu0 0
    %838 = vmatpush1.bf16.msra.mxu0 0
    %839 = vmatprep.subr.bf16.mxu0 0
    %840 = vmatpush1.bf16.msra.mxu0 0
    %841 = vmatprep.subr.bf16.mxu0 0
    %842 = vmatpush1.bf16.msra.mxu0 0
    %843 = vmatprep.subr.bf16.mxu0 0
    %844 = vmatpush1.bf16.msra.mxu0 0
    %845 = vmatprep.subr.bf16.mxu0 0
    %846 = vmatpush1.bf16.msra.mxu0 0
    %847 = vmatprep.subr.bf16.mxu0 0
    %848 = vmatpush1.bf16.msra.mxu0 0
    %849 = vmatprep.mubr.bf16.mxu0 0
    %850 = vmatmul.mubr.bf16.gmra.mrb[0].mxu0 %v815
    %v851 = vpop.f32.mrb[0].mxu0
    %v852 = vadd.f32 %v801, %v851
    %v853 = vpop.f32.mrb[0].mxu0
    %v854 = vpop.f32.mrb[0].mxu0
    %v855 = vadd.f32 %v801, %v854
    %v856 = vpop.f32.mrb[0].mxu0
    %857 = vdwg.mxu0
    %v858 = vmul.f32 %v852, %v852
    %v859 = vmul.f32 %v855, %v855
    %v860 = vmul.f32 %v852, %v858
    %v861 = vmul.f32 %v855, %v859
    %v862 = vmul.f32 %v860, 0.044715
    %v863 = vmul.f32 %v861, 0.044715
    %v864 = vadd.f32 %v852, %v862
    %v865 = vadd.f32 %v855, %v863
    %v866 = vmul.f32 %v864, 0.7978846
    %v867 = vmul.f32 %v865, 0.7978846
    %v868 = vtanh.pop %v866
    %v869 = vtanh.pop %v867
    %v870 = vadd.f32 %v868, 1.0
    %v871 = vadd.f32 %v869, 1.0
    %v872 = vmul.f32 %v870, 0.5
    %v873 = vmul.f32 %v871, 0.5
    %v874 = vmul.f32 %v852, %v872
    %v875 = vmul.f32 %v855, %v873
    %v876 = vld [vmem:[#allocation5 + $0x30] sm:$0xf]
    %v877 = vld [vmem:[#allocation5 + $0x34] sm:$0xf]
    %v878 = vld [vmem:[#allocation5 + $0x38] sm:$0xf]
    %v879 = vld [vmem:[#allocation5 + $0x3c] sm:$0xf]
    %v880 = vld [vmem:[#allocation5 + $0x40] sm:$0xf]
    %v881 = vld [vmem:[#allocation5 + $0x44] sm:$0xf]
    %v882 = vld [vmem:[#allocation5 + $0x48] sm:$0xf]
    %v883 = vld [vmem:[#allocation5 + $0x4c] sm:$0xf]
    %v884 = vld [vmem:[#allocation7 + $0x7] sm:$0x1]
    %v885 = vpack.c.bf16 %v875, %v874
    %v886 = vlaneseq
    %v887 = vshrl.u32 %v886, 7
    %v888 = vsub.s32 0, %v887
    %v889 = vrot.slane %v884, %v888
    %v898 = vunpack.c.l.b16 %v876
    %v899 = vunpack.c.l.b16 %v877
    %v900 = vunpack.c.l.b16 %v878
    %v901 = vunpack.c.l.b16 %v879
    %v902 = vunpack.c.l.b16 %v880
    %v903 = vunpack.c.l.b16 %v881
    %v904 = vunpack.c.l.b16 %v882
    %v905 = vunpack.c.l.b16 %v883
    %v906 = vpack.c.b16 %v899, %v898
    %v907 = vpack.c.b16 %v901, %v900
    %v908 = vpack.c.b16 %v903, %v902
    %v909 = vpack.c.b16 %v905, %v904
    %vm914 = vcmask 523264
    %v916 = vsel %vm914, %v885, 0
    %918 = vmatprep.subr.bf16.mxu0 0
    %919 = vmatpush1.bf16.msra.mxu0 %v906
    %920 = vmatprep.subr.bf16.mxu0 0
    %921 = vmatpush1.bf16.msra.mxu0 %v907
    %922 = vmatprep.subr.bf16.mxu0 0
    %923 = vmatpush1.bf16.msra.mxu0 %v908
    %924 = vmatprep.subr.bf16.mxu0 0
    %925 = vmatpush1.bf16.msra.mxu0 %v909
    %926 = vmatprep.subr.bf16.mxu0 0
    %927 = vmatpush1.bf16.msra.mxu0 0
    %928 = vmatprep.subr.bf16.mxu0 0
    %929 = vmatpush1.bf16.msra.mxu0 0
    %930 = vmatprep.subr.bf16.mxu0 0
    %931 = vmatpush1.bf16.msra.mxu0 0
    %932 = vmatprep.subr.bf16.mxu0 0
    %933 = vmatpush1.bf16.msra.mxu0 0
    %934 = vmatprep.subr.bf16.mxu0 0
    %935 = vmatpush1.bf16.msra.mxu0 0
    %936 = vmatprep.subr.bf16.mxu0 0
    %937 = vmatpush1.bf16.msra.mxu0 0
    %938 = vmatprep.subr.bf16.mxu0 0
    %939 = vmatpush1.bf16.msra.mxu0 0
    %940 = vmatprep.subr.bf16.mxu0 0
    %941 = vmatpush1.bf16.msra.mxu0 0
    %942 = vmatprep.subr.bf16.mxu0 0
    %943 = vmatpush1.bf16.msra.mxu0 0
    %944 = vmatprep.subr.bf16.mxu0 0
    %945 = vmatpush1.bf16.msra.mxu0 0
    %946 = vmatprep.subr.bf16.mxu0 0
    %947 = vmatpush1.bf16.msra.mxu0 0
    %948 = vmatprep.subr.bf16.mxu0 0
    %949 = vmatpush1.bf16.msra.mxu0 0
    %950 = vmatprep.mubr.bf16.mxu0 0
    %951 = vmatmul.mubr.bf16.gmra.mrb[0].mxu0 %v916
    %v952 = vpop.f32.mrb[0].mxu0
    %v953 = vadd.f32 %v889, %v952
    %v954 = vpop.f32.mrb[0].mxu0
    %v955 = vpop.f32.mrb[0].mxu0
    %v956 = vadd.f32 %v889, %v955
    %v957 = vpop.f32.mrb[0].mxu0
    %958 = vdwg.mxu0
    %v959 = vadd.f32 %v953, %v790
    %v960 = vadd.f32 %v956, %v791
    %v961 = vld [vmem:[#allocation7 + $0x8] sm:$0x1]
    %v962 = vld [vmem:[#allocation7 + $0x9] sm:$0x1]
    %v963 = vsel %vm64, %v959, 0.0
    %964 = vadd.xlane.f32.xlu0 %v963
    %v965 = vpop.xlane.xlu0 %964
    %v966 = vsel %vm64, %v960, 0.0
    %967 = vadd.xlane.f32.xlu0 %v966
    %v968 = vpop.xlane.xlu0 %967
    %v969 = vmul.f32 %v965, %v71
    %v970 = vmul.f32 %v968, %v71
    %v971 = vsub.f32 %v959, %v969
    %v972 = vsub.f32 %v960, %v970
    %v973 = vmul.f32 %v971, %v971
    %v974 = vmul.f32 %v972, %v972
    %v975 = vsel %vm64, %v973, 0.0
    %976 = vadd.xlane.f32.xlu0 %v975
    %v977 = vpop.xlane.xlu0 %976
    %v978 = vsel %vm64, %v974, 0.0
    %979 = vadd.xlane.f32.xlu0 %v978
    %v980 = vpop.xlane.xlu0 %979
    %v981 = vmul.f32 %v977, %v71
    %v982 = vmul.f32 %v980, %v71
    %v983 = vadd.f32 %v981, 1e-12
    %v984 = vadd.f32 %v982, 1e-12
    %v985 = vrsqrt.pop %v983
    %v986 = vrsqrt.pop %v984
    %v987 = vmul.f32 %v971, %v985
    %v988 = vmul.f32 %v972, %v986
    %v989 = vlaneseq
    %v990 = vshrl.u32 %v989, 7
    %v991 = vsub.s32 0, %v990
    %v992 = vrot.slane %v961, %v991
    %v993 = vmul.f32 %v987, %v992
    %v994 = vmul.f32 %v988, %v992
    %v995 = vlaneseq
    %v996 = vshrl.u32 %v995, 7
    %v997 = vsub.s32 0, %v996
    %v998 = vrot.slane %v962, %v997
    %v999 = vadd.f32 %v993, %v998
    %v1000 = vadd.f32 %v994, %v998
    %v1001 = vld [vmem:[#allocation5 + $0x50] sm:$0xf]
    %v1002 = vld [vmem:[#allocation5 + $0x54] sm:$0xf]
    %v1003 = vld [vmem:[#allocation5 + $0x58] sm:$0xf]
    %v1004 = vld [vmem:[#allocation5 + $0x5c] sm:$0xf]
    %v1005 = vld [vmem:[#allocation7 + $0xa] sm:$0x1]
    %v1006 = vpack.c.bf16 %v1000, %v999
    %v1007 = vlaneseq
    %v1008 = vshrl.u32 %v1007, 7
    %v1009 = vsub.s32 0, %v1008
    %v1010 = vrot.slane %v1005, %v1009
    %v1015 = vunpack.c.l.b16 %v1001
    %v1016 = vunpack.c.l.b16 %v1002
    %v1017 = vunpack.c.l.b16 %v1003
    %v1018 = vunpack.c.l.b16 %v1004
    %v1019 = vpack.c.b16 %v1016, %v1015
    %v1020 = vpack.c.b16 %v1018, %v1017
    %v1024 = vsel %vm64, %v1006, 0
    %1026 = vmatprep.subr.bf16.mxu0 0
    %1027 = vmatpush1.bf16.msra.mxu0 %v1019
    %1028 = vmatprep.subr.bf16.mxu0 0
    %1029 = vmatpush1.bf16.msra.mxu0 %v1020
    %1030 = vmatprep.subr.bf16.mxu0 0
    %1031 = vmatpush1.bf16.msra.mxu0 0
    %1032 = vmatprep.subr.bf16.mxu0 0
    %1033 = vmatpush1.bf16.msra.mxu0 0
    %1034 = vmatprep.subr.bf16.mxu0 0
    %1035 = vmatpush1.bf16.msra.mxu0 0
    %1036 = vmatprep.subr.bf16.mxu0 0
    %1037 = vmatpush1.bf16.msra.mxu0 0
    %1038 = vmatprep.subr.bf16.mxu0 0
    %1039 = vmatpush1.bf16.msra.mxu0 0
    %1040 = vmatprep.subr.bf16.mxu0 0
    %1041 = vmatpush1.bf16.msra.mxu0 0
    %1042 = vmatprep.subr.bf16.mxu0 0
    %1043 = vmatpush1.bf16.msra.mxu0 0
    %1044 = vmatprep.subr.bf16.mxu0 0
    %1045 = vmatpush1.bf16.msra.mxu0 0
    %1046 = vmatprep.subr.bf16.mxu0 0
    %1047 = vmatpush1.bf16.msra.mxu0 0
    %1048 = vmatprep.subr.bf16.mxu0 0
    %1049 = vmatpush1.bf16.msra.mxu0 0
    %1050 = vmatprep.subr.bf16.mxu0 0
    %1051 = vmatpush1.bf16.msra.mxu0 0
    %1052 = vmatprep.subr.bf16.mxu0 0
    %1053 = vmatpush1.bf16.msra.mxu0 0
    %1054 = vmatprep.subr.bf16.mxu0 0
    %1055 = vmatpush1.bf16.msra.mxu0 0
    %1056 = vmatprep.subr.bf16.mxu0 0
    %1057 = vmatpush1.bf16.msra.mxu0 0
    %1058 = vmatprep.mubr.bf16.mxu0 0
    %1059 = vmatmul.mubr.bf16.gmra.mrb[0].mxu0 %v1024
    %v1060 = vpop.f32.mrb[0].mxu0
    %v1061 = vadd.f32 %v1010, %v1060
    %v1062 = vpop.f32.mrb[0].mxu0
    %v1063 = vpop.f32.mrb[0].mxu0
    %v1064 = vadd.f32 %v1010, %v1063
    %v1065 = vpop.f32.mrb[0].mxu0
    %1066 = vdwg.mxu0
    %v1067 = vld [vmem:[#allocation5 + $0x60] sm:$0xf]
    %v1068 = vld [vmem:[#allocation5 + $0x64] sm:$0xf]
    %v1069 = vld [vmem:[#allocation5 + $0x68] sm:$0xf]
    %v1070 = vld [vmem:[#allocation5 + $0x6c] sm:$0xf]
    %v1071 = vpack.c.bf16 %v1064, %v1061
    %v1073 = vunpack.c.l.b16 %v1071
    %v1074 = vunpack.c.h.b16 %v1071
    %v1075 = vpack.c.b16 %v1073, %v1073
    %v1076 = vpack.c.b16 %v1074, %v1074
    %1077 = vrot.lane.b32.xlu0 %v1075, 96
    %v1078 = vpop.permute.xlu0 %1077
    %v1080 = vsel %vm196, %v1075, 0
    %v1083 = vsel %vm196, %v1078, 0
    %1085 = vmatprep.subr.bf16.mxu0 0
    %1086 = vmatpush1.bf16.xpose.msra.mxu0 %v1083
    %1087 = vmatprep.subr.bf16.mxu0 0
    %1088 = vmatpush1.bf16.xpose.msra.mxu0 0
    %1089 = vmatprep.subr.bf16.mxu0 0
    %1090 = vmatpush1.bf16.xpose.msra.mxu0 0
    %1091 = vmatprep.subr.bf16.mxu0 0
    %1092 = vmatpush1.bf16.xpose.msra.mxu0 0
    %1093 = vmatprep.subr.bf16.mxu0 0
    %1094 = vmatpush1.bf16.xpose.msra.mxu0 0
    %1095 = vmatprep.subr.bf16.mxu0 0
    %1096 = vmatpush1.bf16.xpose.msra.mxu0 0
    %1097 = vmatprep.subr.bf16.mxu0 0
    %1098 = vmatpush1.bf16.xpose.msra.mxu0 0
    %1099 = vmatprep.subr.bf16.mxu0 0
    %1100 = vmatpush1.bf16.xpose.msra.mxu0 0
    %1101 = vmatprep.subr.bf16.mxu0 0
    %1102 = vmatpush1.bf16.xpose.msra.mxu0 0
    %1103 = vmatprep.subr.bf16.mxu0 0
    %1104 = vmatpush1.bf16.xpose.msra.mxu0 0
    %1105 = vmatprep.subr.bf16.mxu0 0
    %1106 = vmatpush1.bf16.xpose.msra.mxu0 0
    %1107 = vmatprep.subr.bf16.mxu0 0
    %1108 = vmatpush1.bf16.xpose.msra.mxu0 0
    %1109 = vmatprep.subr.bf16.mxu0 0
    %1110 = vmatpush1.bf16.xpose.msra.mxu0 0
    %1111 = vmatprep.subr.bf16.mxu0 0
    %1112 = vmatpush1.bf16.xpose.msra.mxu0 0
    %1113 = vmatprep.subr.bf16.mxu0 0
    %1114 = vmatpush1.bf16.xpose.msra.mxu0 0
    %1115 = vmatprep.subr.bf16.mxu0 0
    %1116 = vmatpush1.bf16.xpose.msra.mxu0 0
    %1117 = vmatprep.mubr.bf16.mxu0 0
    %1118 = vmatmul.mubr.bf16.gmra.mrb[0].mxu0 %v1080
    %v1119 = vpop.f32.mrb[0].mxu0
    %v1120 = vadd.f32 0.0, %v1119
    %v1121 = vpop.f32.mrb[0].mxu0
    %v1122 = vpop.f32.mrb[0].mxu0
    %v1123 = vpop.f32.mrb[0].mxu0
    %1124 = vdwg.mxu0
    %1125 = vrot.lane.b32.xlu0 %v1076, 96
    %v1126 = vpop.permute.xlu0 %1125
    %v1128 = vsel %vm196, %v1076, 0
    %v1131 = vsel %vm196, %v1126, 0
    %1133 = vmatprep.subr.bf16.mxu0 0
    %1134 = vmatpush1.bf16.xpose.msra.mxu0 %v1131
    %1135 = vmatprep.subr.bf16.mxu0 0
    %1136 = vmatpush1.bf16.xpose.msra.mxu0 0
    %1137 = vmatprep.subr.bf16.mxu0 0
    %1138 = vmatpush1.bf16.xpose.msra.mxu0 0
    %1139 = vmatprep.subr.bf16.mxu0 0
    %1140 = vmatpush1.bf16.xpose.msra.mxu0 0
    %1141 = vmatprep.subr.bf16.mxu0 0
    %1142 = vmatpush1.bf16.xpose.msra.mxu0 0
    %1143 = vmatprep.subr.bf16.mxu0 0
    %1144 = vmatpush1.bf16.xpose.msra.mxu0 0
    %1145 = vmatprep.subr.bf16.mxu0 0
    %1146 = vmatpush1.bf16.xpose.msra.mxu0 0
    %1147 = vmatprep.subr.bf16.mxu0 0
    %1148 = vmatpush1.bf16.xpose.msra.mxu0 0
    %1149 = vmatprep.subr.bf16.mxu0 0
    %1150 = vmatpush1.bf16.xpose.msra.mxu0 0
    %1151 = vmatprep.subr.bf16.mxu0 0
    %1152 = vmatpush1.bf16.xpose.msra.mxu0 0
    %1153 = vmatprep.subr.bf16.mxu0 0
    %1154 = vmatpush1.bf16.xpose.msra.mxu0 0
    %1155 = vmatprep.subr.bf16.mxu0 0
    %1156 = vmatpush1.bf16.xpose.msra.mxu0 0
    %1157 = vmatprep.subr.bf16.mxu0 0
    %1158 = vmatpush1.bf16.xpose.msra.mxu0 0
    %1159 = vmatprep.subr.bf16.mxu0 0
    %1160 = vmatpush1.bf16.xpose.msra.mxu0 0
    %1161 = vmatprep.subr.bf16.mxu0 0
    %1162 = vmatpush1.bf16.xpose.msra.mxu0 0
    %1163 = vmatprep.subr.bf16.mxu0 0
    %1164 = vmatpush1.bf16.xpose.msra.mxu0 0
    %1165 = vmatprep.mubr.bf16.mxu0 0
    %1166 = vmatmul.mubr.bf16.gmra.mrb[0].mxu0 %v1128
    %v1167 = vpop.f32.mrb[0].mxu0
    %v1168 = vadd.f32 0.0, %v1167
    %v1169 = vpop.f32.mrb[0].mxu0
    %v1170 = vpop.f32.mrb[0].mxu0
    %v1171 = vpop.f32.mrb[0].mxu0
    %1172 = vdwg.mxu0
    %v1173 = vmul.f32 %v1120, 0.25
    %v1174 = vmul.f32 %v1168, 0.25
    %v1175 = vadd.f32 %v1173, %v111
    %v1176 = vadd.f32 %v1174, %v115
    %v1177 = vsel %vm295, %v1175, -inf
    %1178 = vmax.xlane.f32.xlu0 %v1177
    %v1179 = vpop.xlane.xlu0 %1178
    %v1180 = vsel %vm295, %v1176, -inf
    %1181 = vmax.xlane.f32.xlu0 %v1180
    %v1182 = vpop.xlane.xlu0 %1181
    %v1183 = vsub.f32 %v1175, %v1179
    %v1184 = vsub.f32 %v1176, %v1182
    %v1185 = vmul.f32 %v1183, 1.442695
    %v1186 = vpow.pop %v1185
    %v1187 = vmul.f32 %v1184, 1.442695
    %v1188 = vpow.pop %v1187
    %v1189 = vsel %vm295, %v1186, 0.0
    %1190 = vadd.xlane.f32.xlu0 %v1189
    %v1191 = vpop.xlane.xlu0 %1190
    %v1192 = vsel %vm295, %v1188, 0.0
    %1193 = vadd.xlane.f32.xlu0 %v1192
    %v1194 = vpop.xlane.xlu0 %1193
    %v1195 = vrcp.pop %v1191
    %v1196 = vrcp.pop %v1194
    %v1197 = vmul.f32 %v1186, %v1195
    %v1198 = vmul.f32 %v1188, %v1196
    %v1199 = vpack.c.bf16 %v1197, %v1197
    %v1200 = vpack.c.bf16 %v1198, %v1198
    %1201 = vrot.lane.b32.xlu0 %v1075, 64
    %v1202 = vpop.permute.xlu0 %1201
    %v1204 = vsel %vm295, %v1199, 0
    %v1207 = vsel %vm325, %v1202, 0
    %1209 = vmatprep.subr.bf16.mxu0 0
    %1210 = vmatpush1.bf16.msra.mxu0 %v1207
    %1211 = vmatprep.subr.bf16.mxu0 0
    %1212 = vmatpush1.bf16.msra.mxu0 0
    %1213 = vmatprep.subr.bf16.mxu0 0
    %1214 = vmatpush1.bf16.msra.mxu0 0
    %1215 = vmatprep.subr.bf16.mxu0 0
    %1216 = vmatpush1.bf16.msra.mxu0 0
    %1217 = vmatprep.subr.bf16.mxu0 0
    %1218 = vmatpush1.bf16.msra.mxu0 0
    %1219 = vmatprep.subr.bf16.mxu0 0
    %1220 = vmatpush1.bf16.msra.mxu0 0
    %1221 = vmatprep.subr.bf16.mxu0 0
    %1222 = vmatpush1.bf16.msra.mxu0 0
    %1223 = vmatprep.subr.bf16.mxu0 0
    %1224 = vmatpush1.bf16.msra.mxu0 0
    %1225 = vmatprep.subr.bf16.mxu0 0
    %1226 = vmatpush1.bf16.msra.mxu0 0
    %1227 = vmatprep.subr.bf16.mxu0 0
    %1228 = vmatpush1.bf16.msra.mxu0 0
    %1229 = vmatprep.subr.bf16.mxu0 0
    %1230 = vmatpush1.bf16.msra.mxu0 0
    %1231 = vmatprep.subr.bf16.mxu0 0
    %1232 = vmatpush1.bf16.msra.mxu0 0
    %1233 = vmatprep.subr.bf16.mxu0 0
    %1234 = vmatpush1.bf16.msra.mxu0 0
    %1235 = vmatprep.subr.bf16.mxu0 0
    %1236 = vmatpush1.bf16.msra.mxu0 0
    %1237 = vmatprep.subr.bf16.mxu0 0
    %1238 = vmatpush1.bf16.msra.mxu0 0
    %1239 = vmatprep.subr.bf16.mxu0 0
    %1240 = vmatpush1.bf16.msra.mxu0 0
    %1241 = vmatprep.mubr.bf16.mxu0 0
    %1242 = vmatmul.mubr.bf16.gmra.mrb[0].mxu0 %v1204
    %v1243 = vpop.f32.mrb[0].mxu0
    %v1244 = vadd.f32 0.0, %v1243
    %v1245 = vpop.f32.mrb[0].mxu0
    %v1246 = vpop.f32.mrb[0].mxu0
    %v1247 = vpop.f32.mrb[0].mxu0
    %1248 = vdwg.mxu0
    %1249 = vrot.lane.b32.xlu0 %v1076, 64
    %v1250 = vpop.permute.xlu0 %1249
    %v1252 = vsel %vm295, %v1200, 0
    %v1255 = vsel %vm325, %v1250, 0
    %1257 = vmatprep.subr.bf16.mxu0 0
    %1258 = vmatpush1.bf16.msra.mxu0 %v1255
    %1259 = vmatprep.subr.bf16.mxu0 0
    %1260 = vmatpush1.bf16.msra.mxu0 0
    %1261 = vmatprep.subr.bf16.mxu0 0
    %1262 = vmatpush1.bf16.msra.mxu0 0
    %1263 = vmatprep.subr.bf16.mxu0 0
    %1264 = vmatpush1.bf16.msra.mxu0 0
    %1265 = vmatprep.subr.bf16.mxu0 0
    %1266 = vmatpush1.bf16.msra.mxu0 0
    %1267 = vmatprep.subr.bf16.mxu0 0
    %1268 = vmatpush1.bf16.msra.mxu0 0
    %1269 = vmatprep.subr.bf16.mxu0 0
    %1270 = vmatpush1.bf16.msra.mxu0 0
    %1271 = vmatprep.subr.bf16.mxu0 0
    %1272 = vmatpush1.bf16.msra.mxu0 0
    %1273 = vmatprep.subr.bf16.mxu0 0
    %1274 = vmatpush1.bf16.msra.mxu0 0
    %1275 = vmatprep.subr.bf16.mxu0 0
    %1276 = vmatpush1.bf16.msra.mxu0 0
    %1277 = vmatprep.subr.bf16.mxu0 0
    %1278 = vmatpush1.bf16.msra.mxu0 0
    %1279 = vmatprep.subr.bf16.mxu0 0
    %1280 = vmatpush1.bf16.msra.mxu0 0
    %1281 = vmatprep.subr.bf16.mxu0 0
    %1282 = vmatpush1.bf16.msra.mxu0 0
    %1283 = vmatprep.subr.bf16.mxu0 0
    %1284 = vmatpush1.bf16.msra.mxu0 0
    %1285 = vmatprep.subr.bf16.mxu0 0
    %1286 = vmatpush1.bf16.msra.mxu0 0
    %1287 = vmatprep.subr.bf16.mxu0 0
    %1288 = vmatpush1.bf16.msra.mxu0 0
    %1289 = vmatprep.mubr.bf16.mxu0 0
    %1290 = vmatmul.mubr.bf16.gmra.mrb[0].mxu0 %v1252
    %v1291 = vpop.f32.mrb[0].mxu0
    %v1292 = vadd.f32 0.0, %v1291
    %v1293 = vpop.f32.mrb[0].mxu0
    %v1294 = vpop.f32.mrb[0].mxu0
    %v1295 = vpop.f32.mrb[0].mxu0
    %1296 = vdwg.mxu0
    %v1297 = vpack.c.bf16 %v1292, %v1244
    %1298 = vrot.lane.b32.xlu0 %v1075, 112
    %v1299 = vpop.permute.xlu0 %1298
    %1300 = vrot.lane.b32.xlu0 %v1075, 80
    %v1301 = vpop.permute.xlu0 %1300
    %v1303 = vsel %vm196, %v1299, 0
    %v1306 = vsel %vm196, %v1301, 0
    %1308 = vmatprep.subr.bf16.mxu0 0
    %1309 = vmatpush1.bf16.xpose.msra.mxu0 %v1306
    %1310 = vmatprep.subr.bf16.mxu0 0
    %1311 = vmatpush1.bf16.xpose.msra.mxu0 0
    %1312 = vmatprep.subr.bf16.mxu0 0
    %1313 = vmatpush1.bf16.xpose.msra.mxu0 0
    %1314 = vmatprep.subr.bf16.mxu0 0
    %1315 = vmatpush1.bf16.xpose.msra.mxu0 0
    %1316 = vmatprep.subr.bf16.mxu0 0
    %1317 = vmatpush1.bf16.xpose.msra.mxu0 0
    %1318 = vmatprep.subr.bf16.mxu0 0
    %1319 = vmatpush1.bf16.xpose.msra.mxu0 0
    %1320 = vmatprep.subr.bf16.mxu0 0
    %1321 = vmatpush1.bf16.xpose.msra.mxu0 0
    %1322 = vmatprep.subr.bf16.mxu0 0
    %1323 = vmatpush1.bf16.xpose.msra.mxu0 0
    %1324 = vmatprep.subr.bf16.mxu0 0
    %1325 = vmatpush1.bf16.xpose.msra.mxu0 0
    %1326 = vmatprep.subr.bf16.mxu0 0
    %1327 = vmatpush1.bf16.xpose.msra.mxu0 0
    %1328 = vmatprep.subr.bf16.mxu0 0
    %1329 = vmatpush1.bf16.xpose.msra.mxu0 0
    %1330 = vmatprep.subr.bf16.mxu0 0
    %1331 = vmatpush1.bf16.xpose.msra.mxu0 0
    %1332 = vmatprep.subr.bf16.mxu0 0
    %1333 = vmatpush1.bf16.xpose.msra.mxu0 0
    %1334 = vmatprep.subr.bf16.mxu0 0
    %1335 = vmatpush1.bf16.xpose.msra.mxu0 0
    %1336 = vmatprep.subr.bf16.mxu0 0
    %1337 = vmatpush1.bf16.xpose.msra.mxu0 0
    %1338 = vmatprep.subr.bf16.mxu0 0
    %1339 = vmatpush1.bf16.xpose.msra.mxu0 0
    %1340 = vmatprep.mubr.bf16.mxu0 0
    %1341 = vmatmul.mubr.bf16.gmra.mrb[0].mxu0 %v1303
    %v1342 = vpop.f32.mrb[0].mxu0
    %v1343 = vadd.f32 0.0, %v1342
    %v1344 = vpop.f32.mrb[0].mxu0
    %v1345 = vpop.f32.mrb[0].mxu0
    %v1346 = vpop.f32.mrb[0].mxu0
    %1347 = vdwg.mxu0
    %1348 = vrot.lane.b32.xlu0 %v1076, 112
    %v1349 = vpop.permute.xlu0 %1348
    %1350 = vrot.lane.b32.xlu0 %v1076, 80
    %v1351 = vpop.permute.xlu0 %1350
    %v1353 = vsel %vm196, %v1349, 0
    %v1356 = vsel %vm196, %v1351, 0
    %1358 = vmatprep.subr.bf16.mxu0 0
    %1359 = vmatpush1.bf16.xpose.msra.mxu0 %v1356
    %1360 = vmatprep.subr.bf16.mxu0 0
    %1361 = vmatpush1.bf16.xpose.msra.mxu0 0
    %1362 = vmatprep.subr.bf16.mxu0 0
    %1363 = vmatpush1.bf16.xpose.msra.mxu0 0
    %1364 = vmatprep.subr.bf16.mxu0 0
    %1365 = vmatpush1.bf16.xpose.msra.mxu0 0
    %1366 = vmatprep.subr.bf16.mxu0 0
    %1367 = vmatpush1.bf16.xpose.msra.mxu0 0
    %1368 = vmatprep.subr.bf16.mxu0 0
    %1369 = vmatpush1.bf16.xpose.msra.mxu0 0
    %1370 = vmatprep.subr.bf16.mxu0 0
    %1371 = vmatpush1.bf16.xpose.msra.mxu0 0
    %1372 = vmatprep.subr.bf16.mxu0 0
    %1373 = vmatpush1.bf16.xpose.msra.mxu0 0
    %1374 = vmatprep.subr.bf16.mxu0 0
    %1375 = vmatpush1.bf16.xpose.msra.mxu0 0
    %1376 = vmatprep.subr.bf16.mxu0 0
    %1377 = vmatpush1.bf16.xpose.msra.mxu0 0
    %1378 = vmatprep.subr.bf16.mxu0 0
    %1379 = vmatpush1.bf16.xpose.msra.mxu0 0
    %1380 = vmatprep.subr.bf16.mxu0 0
    %1381 = vmatpush1.bf16.xpose.msra.mxu0 0
    %1382 = vmatprep.subr.bf16.mxu0 0
    %1383 = vmatpush1.bf16.xpose.msra.mxu0 0
    %1384 = vmatprep.subr.bf16.mxu0 0
    %1385 = vmatpush1.bf16.xpose.msra.mxu0 0
    %1386 = vmatprep.subr.bf16.mxu0 0
    %1387 = vmatpush1.bf16.xpose.msra.mxu0 0
    %1388 = vmatprep.subr.bf16.mxu0 0
    %1389 = vmatpush1.bf16.xpose.msra.mxu0 0
    %1390 = vmatprep.mubr.bf16.mxu0 0
    %1391 = vmatmul.mubr.bf16.gmra.mrb[0].mxu0 %v1353
    %v1392 = vpop.f32.mrb[0].mxu0
    %v1393 = vadd.f32 0.0, %v1392
    %v1394 = vpop.f32.mrb[0].mxu0
    %v1395 = vpop.f32.mrb[0].mxu0
    %v1396 = vpop.f32.mrb[0].mxu0
    %1397 = vdwg.mxu0
    %v1398 = vmul.f32 %v1343, 0.25
    %v1399 = vmul.f32 %v1393, 0.25
    %v1400 = vadd.f32 %v1398, %v111
    %v1401 = vadd.f32 %v1399, %v115
    %v1402 = vsel %vm295, %v1400, -inf
    %1403 = vmax.xlane.f32.xlu0 %v1402
    %v1404 = vpop.xlane.xlu0 %1403
    %v1405 = vsel %vm295, %v1401, -inf
    %1406 = vmax.xlane.f32.xlu0 %v1405
    %v1407 = vpop.xlane.xlu0 %1406
    %v1408 = vsub.f32 %v1400, %v1404
    %v1409 = vsub.f32 %v1401, %v1407
    %v1410 = vmul.f32 %v1408, 1.442695
    %v1411 = vpow.pop %v1410
    %v1412 = vmul.f32 %v1409, 1.442695
    %v1413 = vpow.pop %v1412
    %v1414 = vsel %vm295, %v1411, 0.0
    %1415 = vadd.xlane.f32.xlu0 %v1414
    %v1416 = vpop.xlane.xlu0 %1415
    %v1417 = vsel %vm295, %v1413, 0.0
    %1418 = vadd.xlane.f32.xlu0 %v1417
    %v1419 = vpop.xlane.xlu0 %1418
    %v1420 = vrcp.pop %v1416
    %v1421 = vrcp.pop %v1419
    %v1422 = vmul.f32 %v1411, %v1420
    %v1423 = vmul.f32 %v1413, %v1421
    %v1424 = vpack.c.bf16 %v1422, %v1422
    %v1425 = vpack.c.bf16 %v1423, %v1423
    %1426 = vrot.lane.b32.xlu0 %v1075, 48
    %v1427 = vpop.permute.xlu0 %1426
    %v1429 = vsel %vm295, %v1424, 0
    %v1432 = vsel %vm325, %v1427, 0
    %1434 = vmatprep.subr.bf16.mxu0 0
    %1435 = vmatpush1.bf16.msra.mxu0 %v1432
    %1436 = vmatprep.subr.bf16.mxu0 0
    %1437 = vmatpush1.bf16.msra.mxu0 0
    %1438 = vmatprep.subr.bf16.mxu0 0
    %1439 = vmatpush1.bf16.msra.mxu0 0
    %1440 = vmatprep.subr.bf16.mxu0 0
    %1441 = vmatpush1.bf16.msra.mxu0 0
    %1442 = vmatprep.subr.bf16.mxu0 0
    %1443 = vmatpush1.bf16.msra.mxu0 0
    %1444 = vmatprep.subr.bf16.mxu0 0
    %1445 = vmatpush1.bf16.msra.mxu0 0
    %1446 = vmatprep.subr.bf16.mxu0 0
    %1447 = vmatpush1.bf16.msra.mxu0 0
    %1448 = vmatprep.subr.bf16.mxu0 0
    %1449 = vmatpush1.bf16.msra.mxu0 0
    %1450 = vmatprep.subr.bf16.mxu0 0
    %1451 = vmatpush1.bf16.msra.mxu0 0
    %1452 = vmatprep.subr.bf16.mxu0 0
    %1453 = vmatpush1.bf16.msra.mxu0 0
    %1454 = vmatprep.subr.bf16.mxu0 0
    %1455 = vmatpush1.bf16.msra.mxu0 0
    %1456 = vmatprep.subr.bf16.mxu0 0
    %1457 = vmatpush1.bf16.msra.mxu0 0
    %1458 = vmatprep.subr.bf16.mxu0 0
    %1459 = vmatpush1.bf16.msra.mxu0 0
    %1460 = vmatprep.subr.bf16.mxu0 0
    %1461 = vmatpush1.bf16.msra.mxu0 0
    %1462 = vmatprep.subr.bf16.mxu0 0
    %1463 = vmatpush1.bf16.msra.mxu0 0
    %1464 = vmatprep.subr.bf16.mxu0 0
    %1465 = vmatpush1.bf16.msra.mxu0 0
    %1466 = vmatprep.mubr.bf16.mxu0 0
    %1467 = vmatmul.mubr.bf16.gmra.mrb[0].mxu0 %v1429
    %v1468 = vpop.f32.mrb[0].mxu0
    %v1469 = vadd.f32 0.0, %v1468
    %v1470 = vpop.f32.mrb[0].mxu0
    %v1471 = vpop.f32.mrb[0].mxu0
    %v1472 = vpop.f32.mrb[0].mxu0
    %1473 = vdwg.mxu0
    %1474 = vrot.lane.b32.xlu0 %v1076, 48
    %v1475 = vpop.permute.xlu0 %1474
    %v1477 = vsel %vm295, %v1425, 0
    %v1480 = vsel %vm325, %v1475, 0
    %1482 = vmatprep.subr.bf16.mxu0 0
    %1483 = vmatpush1.bf16.msra.mxu0 %v1480
    %1484 = vmatprep.subr.bf16.mxu0 0
    %1485 = vmatpush1.bf16.msra.mxu0 0
    %1486 = vmatprep.subr.bf16.mxu0 0
    %1487 = vmatpush1.bf16.msra.mxu0 0
    %1488 = vmatprep.subr.bf16.mxu0 0
    %1489 = vmatpush1.bf16.msra.mxu0 0
    %1490 = vmatprep.subr.bf16.mxu0 0
    %1491 = vmatpush1.bf16.msra.mxu0 0
    %1492 = vmatprep.subr.bf16.mxu0 0
    %1493 = vmatpush1.bf16.msra.mxu0 0
    %1494 = vmatprep.subr.bf16.mxu0 0
    %1495 = vmatpush1.bf16.msra.mxu0 0
    %1496 = vmatprep.subr.bf16.mxu0 0
    %1497 = vmatpush1.bf16.msra.mxu0 0
    %1498 = vmatprep.subr.bf16.mxu0 0
    %1499 = vmatpush1.bf16.msra.mxu0 0
    %1500 = vmatprep.subr.bf16.mxu0 0
    %1501 = vmatpush1.bf16.msra.mxu0 0
    %1502 = vmatprep.subr.bf16.mxu0 0
    %1503 = vmatpush1.bf16.msra.mxu0 0
    %1504 = vmatprep.subr.bf16.mxu0 0
    %1505 = vmatpush1.bf16.msra.mxu0 0
    %1506 = vmatprep.subr.bf16.mxu0 0
    %1507 = vmatpush1.bf16.msra.mxu0 0
    %1508 = vmatprep.subr.bf16.mxu0 0
    %1509 = vmatpush1.bf16.msra.mxu0 0
    %1510 = vmatprep.subr.bf16.mxu0 0
    %1511 = vmatpush1.bf16.msra.mxu0 0
    %1512 = vmatprep.subr.bf16.mxu0 0
    %1513 = vmatpush1.bf16.msra.mxu0 0
    %1514 = vmatprep.mubr.bf16.mxu0 0
    %1515 = vmatmul.mubr.bf16.gmra.mrb[0].mxu0 %v1477
    %v1516 = vpop.f32.mrb[0].mxu0
    %v1517 = vadd.f32 0.0, %v1516
    %v1518 = vpop.f32.mrb[0].mxu0
    %v1519 = vpop.f32.mrb[0].mxu0
    %v1520 = vpop.f32.mrb[0].mxu0
    %1521 = vdwg.mxu0
    %v1522 = vpack.c.bf16 %v1517, %v1469
    %v1525 = vunpack.c.l.b16 %v1069
    %v1526 = vunpack.c.l.b16 %v1070
    %v1527 = vpack.c.b16 %v1526, %v1525
    %v1530 = vsel %vm196, %v1522, 0
    %1532 = vmatprep.subr.bf16.mxu0 0
    %1533 = vmatpush1.bf16.msra.mxu0 %v1527
    %1534 = vmatprep.subr.bf16.mxu0 0
    %1535 = vmatpush1.bf16.msra.mxu0 0
    %1536 = vmatprep.subr.bf16.mxu0 0
    %1537 = vmatpush1.bf16.msra.mxu0 0
    %1538 = vmatprep.subr.bf16.mxu0 0
    %1539 = vmatpush1.bf16.msra.mxu0 0
    %1540 = vmatprep.subr.bf16.mxu0 0
    %1541 = vmatpush1.bf16.msra.mxu0 0
    %1542 = vmatprep.subr.bf16.mxu0 0
    %1543 = vmatpush1.bf16.msra.mxu0 0
    %1544 = vmatprep.subr.bf16.mxu0 0
    %1545 = vmatpush1.bf16.msra.mxu0 0
    %1546 = vmatprep.subr.bf16.mxu0 0
    %1547 = vmatpush1.bf16.msra.mxu0 0
    %1548 = vmatprep.subr.bf16.mxu0 0
    %1549 = vmatpush1.bf16.msra.mxu0 0
    %1550 = vmatprep.subr.bf16.mxu0 0
    %1551 = vmatpush1.bf16.msra.mxu0 0
    %1552 = vmatprep.subr.bf16.mxu0 0
    %1553 = vmatpush1.bf16.msra.mxu0 0
    %1554 = vmatprep.subr.bf16.mxu0 0
    %1555 = vmatpush1.bf16.msra.mxu0 0
    %1556 = vmatprep.subr.bf16.mxu0 0
    %1557 = vmatpush1.bf16.msra.mxu0 0
    %1558 = vmatprep.subr.bf16.mxu0 0
    %1559 = vmatpush1.bf16.msra.mxu0 0
    %1560 = vmatprep.subr.bf16.mxu0 0
    %1561 = vmatpush1.bf16.msra.mxu0 0
    %1562 = vmatprep.subr.bf16.mxu0 0
    %1563 = vmatpush1.bf16.msra.mxu0 0
    %1564 = vmatprep.mubr.bf16.mxu0 0
    %1565 = vmatmul.mubr.bf16.gmra.mrb[0].mxu0 %v1530
    %v1566 = vpop.f32.mrb[0].mxu0
    %v1567 = vadd.f32 0.0, %v1566
    %v1568 = vpop.f32.mrb[0].mxu0
    %v1569 = vpop.f32.mrb[0].mxu0
    %v1570 = vadd.f32 0.0, %v1569
    %v1571 = vpop.f32.mrb[0].mxu0
    %1572 = vdwg.mxu0
    %v1575 = vunpack.c.l.b16 %v1067
    %v1576 = vunpack.c.l.b16 %v1068
    %v1577 = vpack.c.b16 %v1576, %v1575
    %v1580 = vsel %vm196, %v1297, 0
    %1582 = vmatprep.subr.bf16.mxu0 0
    %1583 = vmatpush1.bf16.msra.mxu0 %v1577
    %1584 = vmatprep.subr.bf16.mxu0 0
    %1585 = vmatpush1.bf16.msra.mxu0 0
    %1586 = vmatprep.subr.bf16.mxu0 0
    %1587 = vmatpush1.bf16.msra.mxu0 0
    %1588 = vmatprep.subr.bf16.mxu0 0
    %1589 = vmatpush1.bf16.msra.mxu0 0
    %1590 = vmatprep.subr.bf16.mxu0 0
    %1591 = vmatpush1.bf16.msra.mxu0 0
    %1592 = vmatprep.subr.bf16.mxu0 0
    %1593 = vmatpush1.bf16.msra.mxu0 0
    %1594 = vmatprep.subr.bf16.mxu0 0
    %1595 = vmatpush1.bf16.msra.mxu0 0
    %1596 = vmatprep.subr.bf16.mxu0 0
    %1597 = vmatpush1.bf16.msra.mxu0 0
    %1598 = vmatprep.subr.bf16.mxu0 0
    %1599 = vmatpush1.bf16.msra.mxu0 0
    %1600 = vmatprep.subr.bf16.mxu0 0
    %1601 = vmatpush1.bf16.msra.mxu0 0
    %1602 = vmatprep.subr.bf16.mxu0 0
    %1603 = vmatpush1.bf16.msra.mxu0 0
    %1604 = vmatprep.subr.bf16.mxu0 0
    %1605 = vmatpush1.bf16.msra.mxu0 0
    %1606 = vmatprep.subr.bf16.mxu0 0
    %1607 = vmatpush1.bf16.msra.mxu0 0
    %1608 = vmatprep.subr.bf16.mxu0 0
    %1609 = vmatpush1.bf16.msra.mxu0 0
    %1610 = vmatprep.subr.bf16.mxu0 0
    %1611 = vmatpush1.bf16.msra.mxu0 0
    %1612 = vmatprep.subr.bf16.mxu0 0
    %1613 = vmatpush1.bf16.msra.mxu0 0
    %1614 = vmatprep.mubr.bf16.mxu0 0
    %1615 = vmatmul.mubr.bf16.gmra.mrb[0].mxu0 %v1580
    %v1616 = vpop.f32.mrb[0].mxu0
    %v1617 = vadd.f32 %v1567, %v1616
    %v1618 = vpop.f32.mrb[0].mxu0
    %v1619 = vpop.f32.mrb[0].mxu0
    %v1620 = vadd.f32 %v1570, %v1619
    %v1621 = vpop.f32.mrb[0].mxu0
    %1622 = vdwg.mxu0
    %v1623 = vld [vmem:[#allocation7 + $0xb] sm:$0x1]
    %v1624 = vlaneseq
    %v1625 = vshrl.u32 %v1624, 7
    %v1626 = vsub.s32 0, %v1625
    %v1627 = vrot.slane %v1623, %v1626
    %v1628 = vadd.f32 %v1617, %v1627
    %v1629 = vadd.f32 %v1620, %v1627
    %v1630 = vadd.f32 %v1628, %v999
    %v1631 = vadd.f32 %v1629, %v1000
    %v1632 = vld [vmem:[#allocation7 + $0xc] sm:$0x1]
    %v1633 = vld [vmem:[#allocation7 + $0xd] sm:$0x1]
    %v1634 = vsel %vm64, %v1630, 0.0
    %1635 = vadd.xlane.f32.xlu0 %v1634
    %v1636 = vpop.xlane.xlu0 %1635
    %v1637 = vsel %vm64, %v1631, 0.0
    %1638 = vadd.xlane.f32.xlu0 %v1637
    %v1639 = vpop.xlane.xlu0 %1638
    %v1640 = vmul.f32 %v1636, %v71
    %v1641 = vmul.f32 %v1639, %v71
    %v1642 = vsub.f32 %v1630, %v1640
    %v1643 = vsub.f32 %v1631, %v1641
    %v1644 = vmul.f32 %v1642, %v1642
    %v1645 = vmul.f32 %v1643, %v1643
    %v1646 = vsel %vm64, %v1644, 0.0
    %1647 = vadd.xlane.f32.xlu0 %v1646
    %v1648 = vpop.xlane.xlu0 %1647
    %v1649 = vsel %vm64, %v1645, 0.0
    %1650 = vadd.xlane.f32.xlu0 %v1649
    %v1651 = vpop.xlane.xlu0 %1650
    %v1652 = vmul.f32 %v1648, %v71
    %v1653 = vmul.f32 %v1651, %v71
    %v1654 = vadd.f32 %v1652, 1e-12
    %v1655 = vadd.f32 %v1653, 1e-12
    %v1656 = vrsqrt.pop %v1654
    %v1657 = vrsqrt.pop %v1655
    %v1658 = vmul.f32 %v1642, %v1656
    %v1659 = vmul.f32 %v1643, %v1657
    %v1660 = vlaneseq
    %v1661 = vshrl.u32 %v1660, 7
    %v1662 = vsub.s32 0, %v1661
    %v1663 = vrot.slane %v1632, %v1662
    %v1664 = vmul.f32 %v1658, %v1663
    %v1665 = vmul.f32 %v1659, %v1663
    %v1666 = vlaneseq
    %v1667 = vshrl.u32 %v1666, 7
    %v1668 = vsub.s32 0, %v1667
    %v1669 = vrot.slane %v1633, %v1668
    %v1670 = vadd.f32 %v1664, %v1669
    %v1671 = vadd.f32 %v1665, %v1669
    %v1672 = vld [vmem:[#allocation5 + $0x70] sm:$0xf]
    %v1673 = vld [vmem:[#allocation5 + $0x74] sm:$0xf]
    %v1674 = vld [vmem:[#allocation5 + $0x78] sm:$0xf]
    %v1675 = vld [vmem:[#allocation5 + $0x7c] sm:$0xf]
    %v1676 = vld [vmem:[#allocation7 + $0xe] sm:$0x1]
    %v1677 = vpack.c.bf16 %v1671, %v1670
    %v1678 = vlaneseq
    %v1679 = vshrl.u32 %v1678, 7
    %v1680 = vsub.s32 0, %v1679
    %v1681 = vrot.slane %v1676, %v1680
    %v1686 = vunpack.c.l.b16 %v1672
    %v1687 = vunpack.c.l.b16 %v1673
    %v1688 = vunpack.c.l.b16 %v1674
    %v1689 = vunpack.c.l.b16 %v1675
    %v1690 = vpack.c.b16 %v1687, %v1686
    %v1691 = vpack.c.b16 %v1689, %v1688
    %v1695 = vsel %vm64, %v1677, 0
    %1697 = vmatprep.subr.bf16.mxu0 0
    %1698 = vmatpush1.bf16.msra.mxu0 %v1690
    %1699 = vmatprep.subr.bf16.mxu0 0
    %1700 = vmatpush1.bf16.msra.mxu0 %v1691
    %1701 = vmatprep.subr.bf16.mxu0 0
    %1702 = vmatpush1.bf16.msra.mxu0 0
    %1703 = vmatprep.subr.bf16.mxu0 0
    %1704 = vmatpush1.bf16.msra.mxu0 0
    %1705 = vmatprep.subr.bf16.mxu0 0
    %1706 = vmatpush1.bf16.msra.mxu0 0
    %1707 = vmatprep.subr.bf16.mxu0 0
    %1708 = vmatpush1.bf16.msra.mxu0 0
    %1709 = vmatprep.subr.bf16.mxu0 0
    %1710 = vmatpush1.bf16.msra.mxu0 0
    %1711 = vmatprep.subr.bf16.mxu0 0
    %1712 = vmatpush1.bf16.msra.mxu0 0
    %1713 = vmatprep.subr.bf16.mxu0 0
    %1714 = vmatpush1.bf16.msra.mxu0 0
    %1715 = vmatprep.subr.bf16.mxu0 0
    %1716 = vmatpush1.bf16.msra.mxu0 0
    %1717 = vmatprep.subr.bf16.mxu0 0
    %1718 = vmatpush1.bf16.msra.mxu0 0
    %1719 = vmatprep.subr.bf16.mxu0 0
    %1720 = vmatpush1.bf16.msra.mxu0 0
    %1721 = vmatprep.subr.bf16.mxu0 0
    %1722 = vmatpush1.bf16.msra.mxu0 0
    %1723 = vmatprep.subr.bf16.mxu0 0
    %1724 = vmatpush1.bf16.msra.mxu0 0
    %1725 = vmatprep.subr.bf16.mxu0 0
    %1726 = vmatpush1.bf16.msra.mxu0 0
    %1727 = vmatprep.subr.bf16.mxu0 0
    %1728 = vmatpush1.bf16.msra.mxu0 0
    %1729 = vmatprep.mubr.bf16.mxu0 0
    %1730 = vmatmul.mubr.bf16.gmra.mrb[0].mxu0 %v1695
    %v1731 = vpop.f32.mrb[0].mxu0
    %v1732 = vadd.f32 %v1681, %v1731
    %v1733 = vpop.f32.mrb[0].mxu0
    %v1734 = vpop.f32.mrb[0].mxu0
    %v1735 = vadd.f32 %v1681, %v1734
    %v1736 = vpop.f32.mrb[0].mxu0
    %1737 = vdwg.mxu0
    %v1738 = vmul.f32 %v1732, %v1732
    %v1739 = vmul.f32 %v1735, %v1735
    %v1740 = vmul.f32 %v1732, %v1738
    %v1741 = vmul.f32 %v1735, %v1739
    %v1742 = vmul.f32 %v1740, 0.044715
    %v1743 = vmul.f32 %v1741, 0.044715
    %v1744 = vadd.f32 %v1732, %v1742
    %v1745 = vadd.f32 %v1735, %v1743
    %v1746 = vmul.f32 %v1744, 0.7978846
    %v1747 = vmul.f32 %v1745, 0.7978846
    %v1748 = vtanh.pop %v1746
    %v1749 = vtanh.pop %v1747
    %v1750 = vadd.f32 %v1748, 1.0
    %v1751 = vadd.f32 %v1749, 1.0
    %v1752 = vmul.f32 %v1750, 0.5
    %v1753 = vmul.f32 %v1751, 0.5
    %v1754 = vmul.f32 %v1732, %v1752
    %v1755 = vmul.f32 %v1735, %v1753
    %v1756 = vld [vmem:[#allocation5 + $0x80] sm:$0xf]
    %v1757 = vld [vmem:[#allocation5 + $0x84] sm:$0xf]
    %v1758 = vld [vmem:[#allocation5 + $0x88] sm:$0xf]
    %v1759 = vld [vmem:[#allocation5 + $0x8c] sm:$0xf]
    %v1760 = vld [vmem:[#allocation5 + $0x90] sm:$0xf]
    %v1761 = vld [vmem:[#allocation5 + $0x94] sm:$0xf]
    %v1762 = vld [vmem:[#allocation5 + $0x98] sm:$0xf]
    %v1763 = vld [vmem:[#allocation5 + $0x9c] sm:$0xf]
    %v1764 = vld [vmem:[#allocation7 + $0xf] sm:$0x1]
    %v1765 = vpack.c.bf16 %v1755, %v1754
    %v1766 = vlaneseq
    %v1767 = vshrl.u32 %v1766, 7
    %v1768 = vsub.s32 0, %v1767
    %v1769 = vrot.slane %v1764, %v1768
    %v1778 = vunpack.c.l.b16 %v1756
    %v1779 = vunpack.c.l.b16 %v1757
    %v1780 = vunpack.c.l.b16 %v1758
    %v1781 = vunpack.c.l.b16 %v1759
    %v1782 = vunpack.c.l.b16 %v1760
    %v1783 = vunpack.c.l.b16 %v1761
    %v1784 = vunpack.c.l.b16 %v1762
    %v1785 = vunpack.c.l.b16 %v1763
    %v1786 = vpack.c.b16 %v1779, %v1778
    %v1787 = vpack.c.b16 %v1781, %v1780
    %v1788 = vpack.c.b16 %v1783, %v1782
    %v1789 = vpack.c.b16 %v1785, %v1784
    %v1795 = vsel %vm914, %v1765, 0
    %1797 = vmatprep.subr.bf16.mxu0 0
    %1798 = vmatpush1.bf16.msra.mxu0 %v1786
    %1799 = vmatprep.subr.bf16.mxu0 0
    %1800 = vmatpush1.bf16.msra.mxu0 %v1787
    %1801 = vmatprep.subr.bf16.mxu0 0
    %1802 = vmatpush1.bf16.msra.mxu0 %v1788
    %1803 = vmatprep.subr.bf16.mxu0 0
    %1804 = vmatpush1.bf16.msra.mxu0 %v1789
    %1805 = vmatprep.subr.bf16.mxu0 0
    %1806 = vmatpush1.bf16.msra.mxu0 0
    %1807 = vmatprep.subr.bf16.mxu0 0
    %1808 = vmatpush1.bf16.msra.mxu0 0
    %1809 = vmatprep.subr.bf16.mxu0 0
    %1810 = vmatpush1.bf16.msra.mxu0 0
    %1811 = vmatprep.subr.bf16.mxu0 0
    %1812 = vmatpush1.bf16.msra.mxu0 0
    %1813 = vmatprep.subr.bf16.mxu0 0
    %1814 = vmatpush1.bf16.msra.mxu0 0
    %1815 = vmatprep.subr.bf16.mxu0 0
    %1816 = vmatpush1.bf16.msra.mxu0 0
    %1817 = vmatprep.subr.bf16.mxu0 0
    %1818 = vmatpush1.bf16.msra.mxu0 0
    %1819 = vmatprep.subr.bf16.mxu0 0
    %1820 = vmatpush1.bf16.msra.mxu0 0
    %1821 = vmatprep.subr.bf16.mxu0 0
    %1822 = vmatpush1.bf16.msra.mxu0 0
    %1823 = vmatprep.subr.bf16.mxu0 0
    %1824 = vmatpush1.bf16.msra.mxu0 0
    %1825 = vmatprep.subr.bf16.mxu0 0
    %1826 = vmatpush1.bf16.msra.mxu0 0
    %1827 = vmatprep.subr.bf16.mxu0 0
    %1828 = vmatpush1.bf16.msra.mxu0 0
    %1829 = vmatprep.mubr.bf16.mxu0 0
    %1830 = vmatmul.mubr.bf16.gmra.mrb[0].mxu0 %v1795
    %v1831 = vpop.f32.mrb[0].mxu0
    %v1832 = vadd.f32 %v1769, %v1831
    %v1833 = vpop.f32.mrb[0].mxu0
    %v1834 = vpop.f32.mrb[0].mxu0
    %v1835 = vadd.f32 %v1769, %v1834
    %v1836 = vpop.f32.mrb[0].mxu0
    %1837 = vdwg.mxu0
    %v1838 = vadd.f32 %v1832, %v1670
    %v1839 = vadd.f32 %v1835, %v1671
    %v1840 = vld [vmem:[#allocation7 + $0x10] sm:$0x1]
    %v1841 = vld [vmem:[#allocation7 + $0x11] sm:$0x1]
    %v1842 = vsel %vm64, %v1838, 0.0
    %1843 = vadd.xlane.f32.xlu0 %v1842
    %v1844 = vpop.xlane.xlu0 %1843
    %v1845 = vsel %vm64, %v1839, 0.0
    %1846 = vadd.xlane.f32.xlu0 %v1845
    %v1847 = vpop.xlane.xlu0 %1846
    %v1848 = vmul.f32 %v1844, %v71
    %v1849 = vmul.f32 %v1847, %v71
    %v1850 = vsub.f32 %v1838, %v1848
    %v1851 = vsub.f32 %v1839, %v1849
    %v1852 = vmul.f32 %v1850, %v1850
    %v1853 = vmul.f32 %v1851, %v1851
    %v1854 = vsel %vm64, %v1852, 0.0
    %1855 = vadd.xlane.f32.xlu0 %v1854
    %v1856 = vpop.xlane.xlu0 %1855
    %v1857 = vsel %vm64, %v1853, 0.0
    %1858 = vadd.xlane.f32.xlu0 %v1857
    %v1859 = vpop.xlane.xlu0 %1858
    %v1860 = vmul.f32 %v1856, %v71
    %v1861 = vmul.f32 %v1859, %v71
    %v1862 = vadd.f32 %v1860, 1e-12
    %v1863 = vadd.f32 %v1861, 1e-12
    %v1864 = vrsqrt.pop %v1862
    %v1865 = vrsqrt.pop %v1863
    %v1866 = vmul.f32 %v1850, %v1864
    %v1867 = vmul.f32 %v1851, %v1865
    %v1868 = vlaneseq
    %v1869 = vshrl.u32 %v1868, 7
    %v1870 = vsub.s32 0, %v1869
    %v1871 = vrot.slane %v1840, %v1870
    %v1872 = vmul.f32 %v1866, %v1871
    %v1873 = vmul.f32 %v1867, %v1871
    %v1874 = vlaneseq
    %v1875 = vshrl.u32 %v1874, 7
    %v1876 = vsub.s32 0, %v1875
    %v1877 = vrot.slane %v1841, %v1876
    %v1878 = vadd.f32 %v1872, %v1877
    %v1879 = vadd.f32 %v1873, %v1877
    %v1880 = vld [vmem:[#allocation5 + $0xa0] sm:$0xf]
    %v1881 = vld [vmem:[#allocation5 + $0xa4] sm:$0xf]
    %v1882 = vld [vmem:[#allocation5 + $0xa8] sm:$0xf]
    %v1883 = vld [vmem:[#allocation5 + $0xac] sm:$0xf]
    %v1884 = vld [vmem:[#allocation7 + $0x12] sm:$0x1]
    %v1885 = vpack.c.bf16 %v1878, %v1878
    %v1886 = vpack.c.bf16 %v1879, %v1879
    %v1887 = vlaneseq
    %v1888 = vshrl.u32 %v1887, 7
    %v1889 = vsub.s32 0, %v1888
    %v1890 = vrot.slane %v1884, %v1889
    %v1893 = vunpack.c.l.b16 %v1885
    %v1894 = vunpack.c.l.b16 %v1886
    %v1895 = vrot.slane %v1894, 7
    %vm1896 = vcmask 1041409
    %v1897 = vsel %vm1896, %v1895, %v1893
    %v1898 = vpack.c.b16 %v1897, %v1897
    %v1903 = vunpack.c.l.b16 %v1880
    %v1904 = vunpack.c.l.b16 %v1881
    %v1905 = vunpack.c.l.b16 %v1882
    %v1906 = vunpack.c.l.b16 %v1883
    %v1907 = vpack.c.b16 %v1904, %v1903
    %v1908 = vpack.c.b16 %v1906, %v1905
    %v1912 = vsel %vm64, %v1898, 0
    %1914 = vmatprep.subr.bf16.mxu0 0
    %1915 = vmatpush1.bf16.msra.mxu0 %v1907
    %1916 = vmatprep.subr.bf16.mxu0 0
    %1917 = vmatpush1.bf16.msra.mxu0 %v1908
    %1918 = vmatprep.subr.bf16.mxu0 0
    %1919 = vmatpush1.bf16.msra.mxu0 0
    %1920 = vmatprep.subr.bf16.mxu0 0
    %1921 = vmatpush1.bf16.msra.mxu0 0
    %1922 = vmatprep.subr.bf16.mxu0 0
    %1923 = vmatpush1.bf16.msra.mxu0 0
    %1924 = vmatprep.subr.bf16.mxu0 0
    %1925 = vmatpush1.bf16.msra.mxu0 0
    %1926 = vmatprep.subr.bf16.mxu0 0
    %1927 = vmatpush1.bf16.msra.mxu0 0
    %1928 = vmatprep.subr.bf16.mxu0 0
    %1929 = vmatpush1.bf16.msra.mxu0 0
    %1930 = vmatprep.subr.bf16.mxu0 0
    %1931 = vmatpush1.bf16.msra.mxu0 0
    %1932 = vmatprep.subr.bf16.mxu0 0
    %1933 = vmatpush1.bf16.msra.mxu0 0
    %1934 = vmatprep.subr.bf16.mxu0 0
    %1935 = vmatpush1.bf16.msra.mxu0 0
    %1936 = vmatprep.subr.bf16.mxu0 0
    %1937 = vmatpush1.bf16.msra.mxu0 0
    %1938 = vmatprep.subr.bf16.mxu0 0
    %1939 = vmatpush1.bf16.msra.mxu0 0
    %1940 = vmatprep.subr.bf16.mxu0 0
    %1941 = vmatpush1.bf16.msra.mxu0 0
    %1942 = vmatprep.subr.bf16.mxu0 0
    %1943 = vmatpush1.bf16.msra.mxu0 0
    %1944 = vmatprep.subr.bf16.mxu0 0
    %1945 = vmatpush1.bf16.msra.mxu0 0
    %1946 = vmatprep.mubr.bf16.mxu0 0
    %1947 = vmatmul.mubr.bf16.gmra.mrb[0].mxu0 %v1912
    %v1948 = vpop.f32.mrb[0].mxu0
    %v1949 = vadd.f32 %v1890, %v1948
    %v1950 = vpop.f32.mrb[0].mxu0
    %v1951 = vpop.f32.mrb[0].mxu0
    %v1952 = vpop.f32.mrb[0].mxu0
    %1953 = vdwg.mxu0
    %v1954 = vtanh.pop %v1949
    %v1955 = vld [vmem:[#allocation5 + $0xb0] sm:$0xf]
    %v1956 = vld [vmem:[#allocation5 + $0xb4] sm:$0xf]
    %v1957 = vld [vmem:[#allocation5 + $0xb8] sm:$0xf]
    %v1958 = vld [vmem:[#allocation5 + $0xbc] sm:$0xf]
    %v1959 = vld [vmem:[#allocation7 + $0x13] sm:$0x1]
    %v1960 = vpack.c.bf16 %v1954, %v1954
    %v1961 = vlaneseq
    %v1962 = vshrl.u32 %v1961, 7
    %v1963 = vsub.s32 0, %v1962
    %v1964 = vrot.slane %v1959, %v1963
    %v1969 = vunpack.c.l.b16 %v1955
    %v1970 = vunpack.c.l.b16 %v1956
    %v1971 = vunpack.c.l.b16 %v1957
    %v1972 = vunpack.c.l.b16 %v1958
    %v1973 = vpack.c.b16 %v1970, %v1969
    %v1974 = vpack.c.b16 %v1972, %v1971
    %v1978 = vsel %vm64, %v1960, 0
    %1980 = vmatprep.subr.bf16.mxu0 0
    %1981 = vmatpush1.bf16.msra.mxu0 %v1973
    %1982 = vmatprep.subr.bf16.mxu0 0
    %1983 = vmatpush1.bf16.msra.mxu0 %v1974
    %1984 = vmatprep.subr.bf16.mxu0 0
    %1985 = vmatpush1.bf16.msra.mxu0 0
    %1986 = vmatprep.subr.bf16.mxu0 0
    %1987 = vmatpush1.bf16.msra.mxu0 0
    %1988 = vmatprep.subr.bf16.mxu0 0
    %1989 = vmatpush1.bf16.msra.mxu0 0
    %1990 = vmatprep.subr.bf16.mxu0 0
    %1991 = vmatpush1.bf16.msra.mxu0 0
    %1992 = vmatprep.subr.bf16.mxu0 0
    %1993 = vmatpush1.bf16.msra.mxu0 0
    %1994 = vmatprep.subr.bf16.mxu0 0
    %1995 = vmatpush1.bf16.msra.mxu0 0
    %1996 = vmatprep.subr.bf16.mxu0 0
    %1997 = vmatpush1.bf16.msra.mxu0 0
    %1998 = vmatprep.subr.bf16.mxu0 0
    %1999 = vmatpush1.bf16.msra.mxu0 0
    %2000 = vmatprep.subr.bf16.mxu0 0
    %2001 = vmatpush1.bf16.msra.mxu0 0
    %2002 = vmatprep.subr.bf16.mxu0 0
    %2003 = vmatpush1.bf16.msra.mxu0 0
    %2004 = vmatprep.subr.bf16.mxu0 0
    %2005 = vmatpush1.bf16.msra.mxu0 0
    %2006 = vmatprep.subr.bf16.mxu0 0
    %2007 = vmatpush1.bf16.msra.mxu0 0
    %2008 = vmatprep.subr.bf16.mxu0 0
    %2009 = vmatpush1.bf16.msra.mxu0 0
    %2010 = vmatprep.subr.bf16.mxu0 0
    %2011 = vmatpush1.bf16.msra.mxu0 0
    %2012 = vmatprep.mubr.bf16.mxu0 0
    %2013 = vmatmul.mubr.bf16.gmra.mrb[0].mxu0 %v1978
    %v2014 = vpop.f32.mrb[0].mxu0
    %v2015 = vadd.f32 %v1964, %v2014
    %v2016 = vpop.f32.mrb[0].mxu0
    %v2017 = vpop.f32.mrb[0].mxu0
    %v2018 = vpop.f32.mrb[0].mxu0
    %2019 = vdwg.mxu0
    %2020 = vst [vmem:[#allocation8] sm:$0x3] %v2015
    // Predicated region
    $region30: #{tpu_custom_call.1} parent=1 // pred_check
      _
    $region31: #{tpu_custom_call.1} parent=1 // pred_check_branch
      %2022 = sbr.rel (0) target = $region33
    $region32: #{tpu_custom_call.1} parent=1 // pred_region
      %s2024 = ssub.s32 32, 32
      %2025 = vsyncadd [#allocation4], %s2024
      %s2027 = sshll.u32 [#allocation8], 4
      %s2028 = int_to_ptr.vmem [resolvable:$true] %s2027
      %2030 = dma.vmem_to_hbm [thread:$0]  %s2028, 32, %s4, [#allocation4]
    $region33: #{tpu_custom_call.1} parent=1 // pred_fallthru
      _
    // Predicated region
    $region34: #{tpu_custom_call.1} parent=1 // pred_check
      _
    $region35: #{tpu_custom_call.1} parent=1 // pred_check_branch
      %2032 = sbr.rel (0) target = $region37
    $region36: #{tpu_custom_call.1} parent=1 // pred_region
      %2033 = dma.done [#allocation4], 32
    $region37: #{tpu_custom_call.1} parent=1 // pred_fallthru
      _
    %2034 = vsyncpa [#allocation3], 1
    %2035 = vsyncpa [#allocation6], 1
    %2036 = vsyncpa [#allocation4], 1

</llo_original>
